<compile_context>
chip_gen: v5e
topology: v5e:2x2
jax: 0.10.0
libtpu: 0.0.40
codegen_flags: <defaults>
</compile_context>

<pallas_src>
import jax
import jax.numpy as jnp
from jax import lax
from jax.experimental import pallas as pl
from jax.experimental.pallas import tpu as pltpu


# ----------------------------------------------------------------------------
# Fused kernel builder (closes over static layer metadata)
# ----------------------------------------------------------------------------
def _build_fused_kernel(layer_meta, N, L, CP):
    """layer_meta: tuple of (K_max, left_pad, Cin, Cout_total) per layer.
    CP: lane-padded channel width shared by all activations / weight slabs."""
    n_layers = len(layer_meta)
    D = layer_meta[-1][3]
    NL = N * L

    def kernel(*refs):
        x_ref, pos_ref, pool_ref = refs[0:3]               # (NL,CP), (NL,1), (N,NL)
        conv_refs = refs[3:3 + 3 * n_layers]               # per layer: w, scale, shift
        (wh_ref, bh_ref, a1_ref, a2_ref,
         wg1_ref, bg1_ref, wg2_ref, bg2_ref) = refs[3 + 3 * n_layers:11 + 3 * n_layers]
        origin_ref, gat_ref, emb_ref = refs[11 + 3 * n_layers:14 + 3 * n_layers]
        act_ref = refs[14 + 3 * n_layers]                  # (NL, CP) VMEM scratch

        # Position of each flattened row within its sequence, broadcast ONCE
        # (hoisted out of all loops; JAX does not CSE broadcast_in_dim).
        posb = jnp.broadcast_to(pos_ref[...], (NL, CP))    # (NL, CP) int32

        # ---------------- OS-CNN feature extractor ----------------
        # Per layer: tap-accumulated matmul.  Branch weights are pre-merged
        # (zero-padded to K_max taps and CP lanes) so the output is already
        # channel-concatenated and lane dense.
        src_ref = x_ref
        for li, (K, left, cin, cout) in enumerate(layer_meta):
            w_ref = conv_refs[3 * li]                      # (K*CP, CP)
            scale_ref = conv_refs[3 * li + 1]              # (1, CP)
            shift_ref = conv_refs[3 * li + 2]              # (1, CP)

            acc = None
            # K is an architectural constant (<= 5 here); the problem-size
            # dependent per-batch-row loop from v1 no longer exists.
            for t in range(K):
                o = t - left                               # tap offset vs. output pos
                v = src_ref[...]                           # (NL, CP) full-lane load
                if o != 0:
                    # shifted[r] = src[r + o]  (sublane rotation on the XLU)
                    v = pltpu.roll(v, shift=(-o) % NL, axis=0)
                    # zero rows whose source position falls outside [0, L)
                    # (this also kills the batch-crossing / wrap-around rows)
                    valid = (posb < (L - o)) if o > 0 else (posb >= (-o))
                    v = jnp.where(valid, v, 0.0)
                contrib = jnp.dot(v, w_ref[t * CP:(t + 1) * CP, :],
                                  preferred_element_type=jnp.float32)
                acc = contrib if acc is None else acc + contrib

            y = acc * scale_ref[...] + shift_ref[...]      # folded BN
            act_ref[...] = jnp.maximum(y, 0.0)             # ReLU, full-lane store
            src_ref = act_ref

        # ---------------- global average pool over L ----------------
        # h[n] = mean_t act[n*L + t] via the host-built block-diagonal matrix.
        h = jnp.dot(pool_ref[...], act_ref[...],
                    preferred_element_type=jnp.float32)[:, :D]        # (N, D)

        # ---------------- packed head projection [transformation | fc] -------
        hp = jnp.dot(h, wh_ref[...], preferred_element_type=jnp.float32) + bh_ref[...]
        x1 = hp[:, :D]                                     # transformation(h)
        origin_ref[...] = hp[:, D:]                        # fc(h)

        # ---------------- GAT attention ----------------
        # score[i, j] = a2 . x1[i] + a1 . x1[j]
        s_row = lax.dot_general(a1_ref[...], x1,           # (1, N)
                                dimension_numbers=(((1,), (1,)), ((), ())),
                                preferred_element_type=jnp.float32)
        s_col = jnp.dot(x1, a2_ref[...], preferred_element_type=jnp.float32)  # (N, 1)
        scores = s_col + s_row                             # (N, N)
        scores = jnp.where(scores >= 0, scores, 0.01 * scores)   # LeakyReLU(0.01)
        scores = scores - jnp.max(scores, axis=1, keepdims=True)
        e = jnp.exp(scores)
        att = e * pl.reciprocal(jnp.sum(e, axis=1, keepdims=True), approx=True)

        h2 = jnp.dot(att, h, preferred_element_type=jnp.float32) + h
        emb_ref[...] = h2

        # ---------------- gnn_fc_out: Linear -> LeakyReLU -> Linear ----------
        g1 = jnp.dot(h2, wg1_ref[...], preferred_element_type=jnp.float32) + bg1_ref[...]
        g1 = jnp.where(g1 >= 0, g1, 0.01 * g1)
        gat_ref[...] = (jnp.dot(g1, wg2_ref[...], preferred_element_type=jnp.float32)
                        + bg2_ref[...])

    return kernel


# ----------------------------------------------------------------------------
# Forward wrapper: single pallas_call, whole-array VMEM blocks, no grid
# ----------------------------------------------------------------------------
def os_cnn_gat_forward(x_ncl, fused):
    N, cin0, L = x_ncl.shape
    meta, CP = fused["meta"], fused["CP"]
    D, n_class = fused["D"], fused["n_class"]
    NL = N * L

    # NCL -> NLC -> flattened (N*L, Cin0), lane-padded to CP (layout plumbing).
    x2d = jnp.transpose(x_ncl, (0, 2, 1)).reshape(NL, cin0)
    x_pad = jnp.zeros((NL, CP), jnp.float32).at[:, :cin0].set(x2d.astype(jnp.float32))

    # Host-built constants: position-within-sequence and block-diag GAP matrix.
    pos = (jnp.arange(NL, dtype=jnp.int32) % L).reshape(NL, 1)
    r = jnp.arange(N, dtype=jnp.int32)[:, None]
    c = jnp.arange(NL, dtype=jnp.int32)[None, :]
    pool = jnp.where((c >= r * L) & (c < (r + 1) * L),
                     jnp.float32(1.0 / L), jnp.float32(0.0))

    inputs = [x_pad, pos, pool]
    for (w, s, b) in fused["conv"]:
        inputs += [w, s, b]
    inputs += [fused["wh"], fused["bh"], fused["a1"], fused["a2"],
               fused["wg1"], fused["bg1"], fused["wg2"], fused["bg2"]]

    # Advisory cost estimate for XLA's scheduler.
    flops = 0
    for (k, _, _, _) in meta:
        flops += 2 * NL * CP * CP * k          # tap-accumulated conv matmuls
    flops += 2 * N * NL * CP                   # pooling matmul
    flops += 2 * N * D * (D + n_class)         # packed fc | transformation
    flops += 4 * N * N * D                     # attention scores + att@h
    flops += 2 * N * D * D + 2 * N * D * n_class  # gnn_fc_out
    bytes_accessed = sum(int(a.size) * a.dtype.itemsize for a in inputs)
    bytes_accessed += 4 * (2 * N * n_class + N * D)
    cost = pl.CostEstimate(flops=int(flops), transcendentals=int(N * N + N),
                           bytes_accessed=int(bytes_accessed))

    kernel = _build_fused_kernel(meta, N, L, CP)

    origin, gat, emb = pl.pallas_call(
        kernel,
        out_shape=(jax.ShapeDtypeStruct((N, n_class), jnp.float32),   # origin_out
                   jax.ShapeDtypeStruct((N, n_class), jnp.float32),   # gat_out
                   jax.ShapeDtypeStruct((N, D), jnp.float32)),        # x_embeddings
        in_specs=[pl.BlockSpec(memory_space=pltpu.MemorySpace.VMEM)] * len(inputs),
        out_specs=tuple(pl.BlockSpec(memory_space=pltpu.MemorySpace.VMEM)
                        for _ in range(3)),
        scratch_shapes=[pltpu.VMEM((NL, CP), jnp.float32)],   # resident activations
        compiler_params=pltpu.CompilerParams(vmem_limit_bytes=32 * 1024 * 1024),
        cost_estimate=cost,
    )(*inputs)
    return {"origin_out": origin, "gat_out": gat, "x_embeddings": emb}


# ----------------------------------------------------------------------------
# Parameter init (deterministic, synthetic).  BN is eval-mode and folded.
# ----------------------------------------------------------------------------
def init_params(key, layer_parameter_list, n_class):
    eps = 1e-5
    layers = []
    for layer_spec in layer_parameter_list:
        convs = []
        for (cin, cout, ks) in layer_spec:
            key, k1, k2, k3, k4 = jax.random.split(key, 5)
            w = jax.random.normal(k1, (ks, cin, cout), jnp.float32) / jnp.sqrt(cin * ks)
            b = 0.1 * jax.random.normal(k2, (cout,), jnp.float32)
            gamma = 1.0 + 0.1 * jax.random.normal(k3, (cout,), jnp.float32)
            beta = 0.1 * jax.random.normal(k4, (cout,), jnp.float32)
            mean = jnp.zeros((cout,), jnp.float32)   # fresh BN running stats
            var = jnp.ones((cout,), jnp.float32)
            scale = gamma / jnp.sqrt(var + eps)
            shift = (b - mean) * scale + beta
            convs.append(dict(w=w, scale=scale.reshape(1, cout),
                              shift=shift.reshape(1, cout), ks=ks))
        layers.append(convs)

    D = sum(spec[1] for spec in layer_parameter_list[-1])
    key, k1, k2, k3, k4, k5, k6, k7, k8, k9 = jax.random.split(key, 10)
    p = dict(layers=layers)
    p["wfc"] = jax.random.normal(k1, (D, n_class), jnp.float32) / jnp.sqrt(D)
    p["bfc"] = 0.1 * jax.random.normal(k2, (1, n_class), jnp.float32)
    p["wt"] = jax.random.normal(k3, (D, D), jnp.float32) / jnp.sqrt(D)
    p["bt"] = 0.1 * jax.random.normal(k4, (1, D), jnp.float32)
    a = jax.random.normal(k5, (2 * D, 1), jnp.float32)        # nn.Parameter(randn(2D,1))
    p["a1"] = a[:D].reshape(1, D)
    p["a2"] = a[D:].reshape(D, 1)
    p["w1"] = jax.random.normal(k6, (D, D), jnp.float32) / jnp.sqrt(D)
    p["b1"] = 0.1 * jax.random.normal(k7, (1, D), jnp.float32)
    p["w2"] = jax.random.normal(k8, (D, n_class), jnp.float32) / jnp.sqrt(D)
    p["b2"] = 0.1 * jax.random.normal(k9, (1, n_class), jnp.float32)
    return p


def build_fused_params(params, lane=128):
    """Merge per-branch conv weights/BN into per-layer slabs, zero-padded to a
    shared lane-multiple channel width CP; pack the head projections."""
    layers = params["layers"]
    cin0 = layers[0][0]["w"].shape[1]
    chan_sizes = [cin0] + [sum(c["w"].shape[2] for c in br) for br in layers]
    CP = int(-(-max(chan_sizes) // lane)) * lane      # round up to 128-lane multiple

    meta, conv = [], []
    prev = cin0
    for branches in layers:
        cin = branches[0]["w"].shape[1]
        assert all(c["w"].shape[1] == cin for c in branches), "branches must share cin"
        assert cin == prev, ("layer input channels must equal the previous "
                             "layer's total output channels")
        kmax = max(c["ks"] for c in branches)
        left = (kmax - 1) // 2
        ctot = sum(c["w"].shape[2] for c in branches)

        wm = jnp.zeros((kmax * CP, CP), jnp.float32)
        scale = jnp.zeros((1, CP), jnp.float32)
        shift = jnp.zeros((1, CP), jnp.float32)
        coff = 0
        for c in branches:
            ks = c["ks"]
            left_b = (ks - 1) // 2
            cout = c["w"].shape[2]
            for tap in range(ks):
                tm = tap + (left - left_b)        # align each branch's "same" padding
                wm = wm.at[tm * CP:tm * CP + cin, coff:coff + cout].set(c["w"][tap])
            scale = scale.at[:, coff:coff + cout].set(c["scale"])
            shift = shift.at[:, coff:coff + cout].set(c["shift"])
            coff += cout
        meta.append((kmax, left, cin, ctot))
        conv.append((wm, scale, shift))
        prev = ctot

    D = meta[-1][3]
    n_class = params["wfc"].shape[1]
    wh = jnp.concatenate([params["wt"], params["wfc"]], axis=1)   # (D, D + n_class)
    bh = jnp.concatenate([params["bt"], params["bfc"]], axis=1)   # (1, D + n_class)
    return dict(meta=tuple(meta), conv=conv, CP=CP, wh=wh, bh=bh,
                a1=params["a1"], a2=params["a2"],
                wg1=params["w1"], bg1=params["b1"],
                wg2=params["w2"], bg2=params["b2"],
                D=D, n_class=n_class)


# ----------------------------------------------------------------------------
# Pure-JAX reference (per-branch, unfused) for verification
# ----------------------------------------------------------------------------
def reference_forward(x_ncl, params):
    def lrelu(v):
        return jnp.where(v >= 0, v, 0.01 * v)

    x = jnp.transpose(x_ncl, (0, 2, 1))
    for layer in params["layers"]:
        outs = []
        for c in layer:
            ks = c["ks"]
            left, right = (ks - 1) // 2, ks // 2
            xp = jnp.pad(x, ((0, 0), (left, right), (0, 0)))
            K, _, Cout = c["w"].shape
            N, L = x.shape[0], x.shape[1]
            acc = jnp.zeros((N, L, Cout), jnp.float32)
            for t in range(K):
                acc = acc + jnp.einsum("nlc,cd->nld", xp[:, t:t + L, :], c["w"][t])
            outs.append(jnp.maximum(acc * c["scale"] + c["shift"], 0.0))
        x = jnp.concatenate(outs, axis=-1)
    h = jnp.mean(x, axis=1)
    origin_out = h @ params["wfc"] + params["bfc"]
    x1 = h @ params["wt"] + params["bt"]
    scores = (x1 @ params["a2"]) + (x1 @ params["a1"].T).T
    att = jax.nn.softmax(lrelu(scores), axis=1)
    h2 = att @ h + h
    gat_out = lrelu(h2 @ params["w1"] + params["b1"]) @ params["w2"] + params["b2"]
    return {"origin_out": origin_out, "gat_out": gat_out, "x_embeddings": h2}


if __name__ == "__main__":
    # small shapes consistent with the module's forward
    layer_parameter_list = [
        [(4, 8, 1), (4, 8, 3), (4, 8, 5)],   # layer 0 -> 24 channels
        [(24, 8, 3), (24, 8, 5)],            # layer 1 -> 16 channels (= D)
    ]
    n_class = 3
    N, C_in, L = 4, 4, 16                    # x: (batch, channels, length)

    key = jax.random.PRNGKey(0)
    key, kx = jax.random.split(key)
    x = jax.random.normal(kx, (N, C_in, L), jnp.float32)
    params = init_params(key, layer_parameter_list, n_class)
    fused = build_fused_params(params)

    out = jax.block_until_ready(os_cnn_gat_forward(x, fused))
    ref = jax.block_until_ready(reference_forward(x, params))

    # origin_out does not go through the approx-reciprocal softmax -> tight tol;
    # gat_out / x_embeddings do -> slightly looser tol to cover the EUP approx path.
    tols = {"origin_out": 2e-3, "gat_out": 1e-2, "x_embeddings": 1e-2}
    for name, tol in tols.items():
        assert out[name].shape == ref[name].shape, name
        assert jnp.allclose(out[name], ref[name], atol=tol, rtol=tol), name

    print("KERNEL_OK")
</pallas_src>

<mosaic_0001>
module attributes {stable_mosaic.version = 11 : i64} {
  func.func @kernel(%arg0: memref<64x128xf32, #tpu.memory_space<vmem>>, %arg1: memref<64x1xi32, #tpu.memory_space<vmem>>, %arg2: memref<4x64xf32, #tpu.memory_space<vmem>>, %arg3: memref<640x128xf32, #tpu.memory_space<vmem>>, %arg4: memref<1x128xf32, #tpu.memory_space<vmem>>, %arg5: memref<1x128xf32, #tpu.memory_space<vmem>>, %arg6: memref<640x128xf32, #tpu.memory_space<vmem>>, %arg7: memref<1x128xf32, #tpu.memory_space<vmem>>, %arg8: memref<1x128xf32, #tpu.memory_space<vmem>>, %arg9: memref<16x19xf32, #tpu.memory_space<vmem>>, %arg10: memref<1x19xf32, #tpu.memory_space<vmem>>, %arg11: memref<1x16xf32, #tpu.memory_space<vmem>>, %arg12: memref<16x1xf32, #tpu.memory_space<vmem>>, %arg13: memref<16x16xf32, #tpu.memory_space<vmem>>, %arg14: memref<1x16xf32, #tpu.memory_space<vmem>>, %arg15: memref<16x3xf32, #tpu.memory_space<vmem>>, %arg16: memref<1x3xf32, #tpu.memory_space<vmem>>, %arg17: memref<4x3xf32, #tpu.memory_space<vmem>>, %arg18: memref<4x3xf32, #tpu.memory_space<vmem>>, %arg19: memref<4x16xf32, #tpu.memory_space<vmem>>, %arg20: memref<64x128xf32, #tpu.memory_space<vmem>>) attributes {dimension_semantics = [], scalar_prefetch = 0 : i64, scratch_operands = 1 : i64, tpu.core_type = #tpu.core_type<tc>} {
    %c0 = arith.constant 0 : index
    %c0_0 = arith.constant 0 : index
    %0 = vector.load %arg1[%c0, %c0_0] : memref<64x1xi32, #tpu.memory_space<vmem>>, vector<64x1xi32>
    %1 = vector.shape_cast %0 : vector<64x1xi32> to vector<64x1xi32>
    %2 = vector.broadcast %1 : vector<64x1xi32> to vector<64x128xi32>
    %c0_1 = arith.constant 0 : index
    %c0_2 = arith.constant 0 : index
    %3 = vector.load %arg0[%c0_1, %c0_2] : memref<64x128xf32, #tpu.memory_space<vmem>>, vector<64x128xf32>
    %c2_i32 = arith.constant 2 : i32
    %4 = tpu.dynamic_rotate %3 by %c2_i32 dim 0 : vector<64x128xf32>, i32 -> vector<64x128xf32>
    %c2_i32_3 = arith.constant 2 : i32
    %5 = vector.broadcast %c2_i32_3 : i32 to vector<64x128xi32>
    %6 = arith.cmpi sge, %2, %5 : vector<64x128xi32>
    %cst = arith.constant 0.000000e+00 : f32
    %7 = vector.broadcast %cst : f32 to vector<64x128xf32>
    %8 = arith.select %6, %4, %7 : vector<64x128xi1>, vector<64x128xf32>
    %c0_4 = arith.constant 0 : index
    %c0_5 = arith.constant 0 : index
    %9 = vector.load %arg3[%c0_4, %c0_5] : memref<640x128xf32, #tpu.memory_space<vmem>>, vector<128x128xf32>
    %cst_6 = arith.constant dense<0.000000e+00> : vector<64x128xf32>
    %10 = tpu.matmul %8, %9, %cst_6 {dimension_numbers = #tpu.dot_dimension_numbers<[1], [0], [0], [1], [0, 0, 1, 1], [], []>} : vector<64x128xf32>, vector<128x128xf32>, vector<64x128xf32> -> vector<64x128xf32>
    %c0_7 = arith.constant 0 : index
    %c0_8 = arith.constant 0 : index
    %11 = vector.load %arg0[%c0_7, %c0_8] : memref<64x128xf32, #tpu.memory_space<vmem>>, vector<64x128xf32>
    %c1_i32 = arith.constant 1 : i32
    %12 = tpu.dynamic_rotate %11 by %c1_i32 dim 0 : vector<64x128xf32>, i32 -> vector<64x128xf32>
    %c1_i32_9 = arith.constant 1 : i32
    %13 = vector.broadcast %c1_i32_9 : i32 to vector<64x128xi32>
    %14 = arith.cmpi sge, %2, %13 : vector<64x128xi32>
    %cst_10 = arith.constant 0.000000e+00 : f32
    %15 = vector.broadcast %cst_10 : f32 to vector<64x128xf32>
    %16 = arith.select %14, %12, %15 : vector<64x128xi1>, vector<64x128xf32>
    %c128 = arith.constant 128 : index
    %c0_11 = arith.constant 0 : index
    %17 = vector.load %arg3[%c128, %c0_11] : memref<640x128xf32, #tpu.memory_space<vmem>>, vector<128x128xf32>
    %cst_12 = arith.constant dense<0.000000e+00> : vector<64x128xf32>
    %18 = tpu.matmul %16, %17, %cst_12 {dimension_numbers = #tpu.dot_dimension_numbers<[1], [0], [0], [1], [0, 0, 1, 1], [], []>} : vector<64x128xf32>, vector<128x128xf32>, vector<64x128xf32> -> vector<64x128xf32>
    %19 = arith.addf %10, %18 : vector<64x128xf32>
    %c0_13 = arith.constant 0 : index
    %c0_14 = arith.constant 0 : index
    %20 = vector.load %arg0[%c0_13, %c0_14] : memref<64x128xf32, #tpu.memory_space<vmem>>, vector<64x128xf32>
    %c256 = arith.constant 256 : index
    %c0_15 = arith.constant 0 : index
    %21 = vector.load %arg3[%c256, %c0_15] : memref<640x128xf32, #tpu.memory_space<vmem>>, vector<128x128xf32>
    %cst_16 = arith.constant dense<0.000000e+00> : vector<64x128xf32>
    %22 = tpu.matmul %20, %21, %cst_16 {dimension_numbers = #tpu.dot_dimension_numbers<[1], [0], [0], [1], [0, 0, 1, 1], [], []>} : vector<64x128xf32>, vector<128x128xf32>, vector<64x128xf32> -> vector<64x128xf32>
    %23 = arith.addf %19, %22 : vector<64x128xf32>
    %c0_17 = arith.constant 0 : index
    %c0_18 = arith.constant 0 : index
    %24 = vector.load %arg0[%c0_17, %c0_18] : memref<64x128xf32, #tpu.memory_space<vmem>>, vector<64x128xf32>
    %c63_i32 = arith.constant 63 : i32
    %25 = tpu.dynamic_rotate %24 by %c63_i32 dim 0 : vector<64x128xf32>, i32 -> vector<64x128xf32>
    %c15_i32 = arith.constant 15 : i32
    %26 = vector.broadcast %c15_i32 : i32 to vector<64x128xi32>
    %27 = arith.cmpi slt, %2, %26 : vector<64x128xi32>
    %cst_19 = arith.constant 0.000000e+00 : f32
    %28 = vector.broadcast %cst_19 : f32 to vector<64x128xf32>
    %29 = arith.select %27, %25, %28 : vector<64x128xi1>, vector<64x128xf32>
    %c384 = arith.constant 384 : index
    %c0_20 = arith.constant 0 : index
    %30 = vector.load %arg3[%c384, %c0_20] : memref<640x128xf32, #tpu.memory_space<vmem>>, vector<128x128xf32>
    %cst_21 = arith.constant dense<0.000000e+00> : vector<64x128xf32>
    %31 = tpu.matmul %29, %30, %cst_21 {dimension_numbers = #tpu.dot_dimension_numbers<[1], [0], [0], [1], [0, 0, 1, 1], [], []>} : vector<64x128xf32>, vector<128x128xf32>, vector<64x128xf32> -> vector<64x128xf32>
    %32 = arith.addf %23, %31 : vector<64x128xf32>
    %c0_22 = arith.constant 0 : index
    %c0_23 = arith.constant 0 : index
    %33 = vector.load %arg0[%c0_22, %c0_23] : memref<64x128xf32, #tpu.memory_space<vmem>>, vector<64x128xf32>
    %c62_i32 = arith.constant 62 : i32
    %34 = tpu.dynamic_rotate %33 by %c62_i32 dim 0 : vector<64x128xf32>, i32 -> vector<64x128xf32>
    %c14_i32 = arith.constant 14 : i32
    %35 = vector.broadcast %c14_i32 : i32 to vector<64x128xi32>
    %36 = arith.cmpi slt, %2, %35 : vector<64x128xi32>
    %cst_24 = arith.constant 0.000000e+00 : f32
    %37 = vector.broadcast %cst_24 : f32 to vector<64x128xf32>
    %38 = arith.select %36, %34, %37 : vector<64x128xi1>, vector<64x128xf32>
    %c512 = arith.constant 512 : index
    %c0_25 = arith.constant 0 : index
    %39 = vector.load %arg3[%c512, %c0_25] : memref<640x128xf32, #tpu.memory_space<vmem>>, vector<128x128xf32>
    %cst_26 = arith.constant dense<0.000000e+00> : vector<64x128xf32>
    %40 = tpu.matmul %38, %39, %cst_26 {dimension_numbers = #tpu.dot_dimension_numbers<[1], [0], [0], [1], [0, 0, 1, 1], [], []>} : vector<64x128xf32>, vector<128x128xf32>, vector<64x128xf32> -> vector<64x128xf32>
    %41 = arith.addf %32, %40 : vector<64x128xf32>
    %c0_27 = arith.constant 0 : index
    %c0_28 = arith.constant 0 : index
    %42 = vector.load %arg4[%c0_27, %c0_28] : memref<1x128xf32, #tpu.memory_space<vmem>>, vector<1x128xf32>
    %43 = vector.broadcast %42 : vector<1x128xf32> to vector<64x128xf32>
    %44 = arith.mulf %41, %43 : vector<64x128xf32>
    %c0_29 = arith.constant 0 : index
    %c0_30 = arith.constant 0 : index
    %45 = vector.load %arg5[%c0_29, %c0_30] : memref<1x128xf32, #tpu.memory_space<vmem>>, vector<1x128xf32>
    %46 = vector.broadcast %45 : vector<1x128xf32> to vector<64x128xf32>
    %47 = arith.addf %44, %46 : vector<64x128xf32>
    %cst_31 = arith.constant 0.000000e+00 : f32
    %48 = vector.broadcast %cst_31 : f32 to vector<64x128xf32>
    %49 = arith.maximumf %47, %48 : vector<64x128xf32>
    %c0_32 = arith.constant 0 : index
    %c0_33 = arith.constant 0 : index
    %50 = vector.load %arg20[%c0_32, %c0_33] : memref<64x128xf32, #tpu.memory_space<vmem>>, vector<64x128xf32>
    tpu.vector_store %arg20[%c0_32, %c0_33], %49 {strides = array<i32>} : memref<64x128xf32, #tpu.memory_space<vmem>>, vector<64x128xf32>,
    %c0_34 = arith.constant 0 : index
    %c0_35 = arith.constant 0 : index
    %51 = vector.load %arg20[%c0_34, %c0_35] : memref<64x128xf32, #tpu.memory_space<vmem>>, vector<64x128xf32>
    %c2_i32_36 = arith.constant 2 : i32
    %52 = tpu.dynamic_rotate %51 by %c2_i32_36 dim 0 : vector<64x128xf32>, i32 -> vector<64x128xf32>
    %c2_i32_37 = arith.constant 2 : i32
    %53 = vector.broadcast %c2_i32_37 : i32 to vector<64x128xi32>
    %54 = arith.cmpi sge, %2, %53 : vector<64x128xi32>
    %cst_38 = arith.constant 0.000000e+00 : f32
    %55 = vector.broadcast %cst_38 : f32 to vector<64x128xf32>
    %56 = arith.select %54, %52, %55 : vector<64x128xi1>, vector<64x128xf32>
    %c0_39 = arith.constant 0 : index
    %c0_40 = arith.constant 0 : index
    %57 = vector.load %arg6[%c0_39, %c0_40] : memref<640x128xf32, #tpu.memory_space<vmem>>, vector<128x128xf32>
    %cst_41 = arith.constant dense<0.000000e+00> : vector<64x128xf32>
    %58 = tpu.matmul %56, %57, %cst_41 {dimension_numbers = #tpu.dot_dimension_numbers<[1], [0], [0], [1], [0, 0, 1, 1], [], []>} : vector<64x128xf32>, vector<128x128xf32>, vector<64x128xf32> -> vector<64x128xf32>
    %c0_42 = arith.constant 0 : index
    %c0_43 = arith.constant 0 : index
    %59 = vector.load %arg20[%c0_42, %c0_43] : memref<64x128xf32, #tpu.memory_space<vmem>>, vector<64x128xf32>
    %c1_i32_44 = arith.constant 1 : i32
    %60 = tpu.dynamic_rotate %59 by %c1_i32_44 dim 0 : vector<64x128xf32>, i32 -> vector<64x128xf32>
    %c1_i32_45 = arith.constant 1 : i32
    %61 = vector.broadcast %c1_i32_45 : i32 to vector<64x128xi32>
    %62 = arith.cmpi sge, %2, %61 : vector<64x128xi32>
    %cst_46 = arith.constant 0.000000e+00 : f32
    %63 = vector.broadcast %cst_46 : f32 to vector<64x128xf32>
    %64 = arith.select %62, %60, %63 : vector<64x128xi1>, vector<64x128xf32>
    %c128_47 = arith.constant 128 : index
    %c0_48 = arith.constant 0 : index
    %65 = vector.load %arg6[%c128_47, %c0_48] : memref<640x128xf32, #tpu.memory_space<vmem>>, vector<128x128xf32>
    %cst_49 = arith.constant dense<0.000000e+00> : vector<64x128xf32>
    %66 = tpu.matmul %64, %65, %cst_49 {dimension_numbers = #tpu.dot_dimension_numbers<[1], [0], [0], [1], [0, 0, 1, 1], [], []>} : vector<64x128xf32>, vector<128x128xf32>, vector<64x128xf32> -> vector<64x128xf32>
    %67 = arith.addf %58, %66 : vector<64x128xf32>
    %c0_50 = arith.constant 0 : index
    %c0_51 = arith.constant 0 : index
    %68 = vector.load %arg20[%c0_50, %c0_51] : memref<64x128xf32, #tpu.memory_space<vmem>>, vector<64x128xf32>
    %c256_52 = arith.constant 256 : index
    %c0_53 = arith.constant 0 : index
    %69 = vector.load %arg6[%c256_52, %c0_53] : memref<640x128xf32, #tpu.memory_space<vmem>>, vector<128x128xf32>
    %cst_54 = arith.constant dense<0.000000e+00> : vector<64x128xf32>
    %70 = tpu.matmul %68, %69, %cst_54 {dimension_numbers = #tpu.dot_dimension_numbers<[1], [0], [0], [1], [0, 0, 1, 1], [], []>} : vector<64x128xf32>, vector<128x128xf32>, vector<64x128xf32> -> vector<64x128xf32>
    %71 = arith.addf %67, %70 : vector<64x128xf32>
    %c0_55 = arith.constant 0 : index
    %c0_56 = arith.constant 0 : index
    %72 = vector.load %arg20[%c0_55, %c0_56] : memref<64x128xf32, #tpu.memory_space<vmem>>, vector<64x128xf32>
    %c63_i32_57 = arith.constant 63 : i32
    %73 = tpu.dynamic_rotate %72 by %c63_i32_57 dim 0 : vector<64x128xf32>, i32 -> vector<64x128xf32>
    %c15_i32_58 = arith.constant 15 : i32
    %74 = vector.broadcast %c15_i32_58 : i32 to vector<64x128xi32>
    %75 = arith.cmpi slt, %2, %74 : vector<64x128xi32>
    %cst_59 = arith.constant 0.000000e+00 : f32
    %76 = vector.broadcast %cst_59 : f32 to vector<64x128xf32>
    %77 = arith.select %75, %73, %76 : vector<64x128xi1>, vector<64x128xf32>
    %c384_60 = arith.constant 384 : index
    %c0_61 = arith.constant 0 : index
    %78 = vector.load %arg6[%c384_60, %c0_61] : memref<640x128xf32, #tpu.memory_space<vmem>>, vector<128x128xf32>
    %cst_62 = arith.constant dense<0.000000e+00> : vector<64x128xf32>
    %79 = tpu.matmul %77, %78, %cst_62 {dimension_numbers = #tpu.dot_dimension_numbers<[1], [0], [0], [1], [0, 0, 1, 1], [], []>} : vector<64x128xf32>, vector<128x128xf32>, vector<64x128xf32> -> vector<64x128xf32>
    %80 = arith.addf %71, %79 : vector<64x128xf32>
    %c0_63 = arith.constant 0 : index
    %c0_64 = arith.constant 0 : index
    %81 = vector.load %arg20[%c0_63, %c0_64] : memref<64x128xf32, #tpu.memory_space<vmem>>, vector<64x128xf32>
    %c62_i32_65 = arith.constant 62 : i32
    %82 = tpu.dynamic_rotate %81 by %c62_i32_65 dim 0 : vector<64x128xf32>, i32 -> vector<64x128xf32>
    %c14_i32_66 = arith.constant 14 : i32
    %83 = vector.broadcast %c14_i32_66 : i32 to vector<64x128xi32>
    %84 = arith.cmpi slt, %2, %83 : vector<64x128xi32>
    %cst_67 = arith.constant 0.000000e+00 : f32
    %85 = vector.broadcast %cst_67 : f32 to vector<64x128xf32>
    %86 = arith.select %84, %82, %85 : vector<64x128xi1>, vector<64x128xf32>
    %c512_68 = arith.constant 512 : index
    %c0_69 = arith.constant 0 : index
    %87 = vector.load %arg6[%c512_68, %c0_69] : memref<640x128xf32, #tpu.memory_space<vmem>>, vector<128x128xf32>
    %cst_70 = arith.constant dense<0.000000e+00> : vector<64x128xf32>
    %88 = tpu.matmul %86, %87, %cst_70 {dimension_numbers = #tpu.dot_dimension_numbers<[1], [0], [0], [1], [0, 0, 1, 1], [], []>} : vector<64x128xf32>, vector<128x128xf32>, vector<64x128xf32> -> vector<64x128xf32>
    %89 = arith.addf %80, %88 : vector<64x128xf32>
    %c0_71 = arith.constant 0 : index
    %c0_72 = arith.constant 0 : index
    %90 = vector.load %arg7[%c0_71, %c0_72] : memref<1x128xf32, #tpu.memory_space<vmem>>, vector<1x128xf32>
    %91 = vector.broadcast %90 : vector<1x128xf32> to vector<64x128xf32>
    %92 = arith.mulf %89, %91 : vector<64x128xf32>
    %c0_73 = arith.constant 0 : index
    %c0_74 = arith.constant 0 : index
    %93 = vector.load %arg8[%c0_73, %c0_74] : memref<1x128xf32, #tpu.memory_space<vmem>>, vector<1x128xf32>
    %94 = vector.broadcast %93 : vector<1x128xf32> to vector<64x128xf32>
    %95 = arith.addf %92, %94 : vector<64x128xf32>
    %cst_75 = arith.constant 0.000000e+00 : f32
    %96 = vector.broadcast %cst_75 : f32 to vector<64x128xf32>
    %97 = arith.maximumf %95, %96 : vector<64x128xf32>
    %c0_76 = arith.constant 0 : index
    %c0_77 = arith.constant 0 : index
    %98 = vector.load %arg20[%c0_76, %c0_77] : memref<64x128xf32, #tpu.memory_space<vmem>>, vector<64x128xf32>
    tpu.vector_store %arg20[%c0_76, %c0_77], %97 {strides = array<i32>} : memref<64x128xf32, #tpu.memory_space<vmem>>, vector<64x128xf32>,
    %c0_78 = arith.constant 0 : index
    %c0_79 = arith.constant 0 : index
    %99 = vector.load %arg2[%c0_78, %c0_79] : memref<4x64xf32, #tpu.memory_space<vmem>>, vector<4x64xf32>
    %c0_80 = arith.constant 0 : index
    %c0_81 = arith.constant 0 : index
    %100 = vector.load %arg20[%c0_80, %c0_81] : memref<64x128xf32, #tpu.memory_space<vmem>>, vector<64x128xf32>
    %cst_82 = arith.constant dense<0.000000e+00> : vector<4x128xf32>
    %101 = tpu.matmul %99, %100, %cst_82 {dimension_numbers = #tpu.dot_dimension_numbers<[1], [0], [0], [1], [0, 0, 1, 1], [], []>} : vector<4x64xf32>, vector<64x128xf32>, vector<4x128xf32> -> vector<4x128xf32>
    %102 = vector.extract_strided_slice %101 {offsets = [0, 0], sizes = [4, 16], strides = [1, 1]} : vector<4x128xf32> to vector<4x16xf32>
    %c0_83 = arith.constant 0 : index
    %c0_84 = arith.constant 0 : index
    %103 = vector.load %arg9[%c0_83, %c0_84] : memref<16x19xf32, #tpu.memory_space<vmem>>, vector<16x19xf32>
    %cst_85 = arith.constant dense<0.000000e+00> : vector<4x19xf32>
    %104 = tpu.matmul %102, %103, %cst_85 {dimension_numbers = #tpu.dot_dimension_numbers<[1], [0], [0], [1], [0, 0, 1, 1], [], []>} : vector<4x16xf32>, vector<16x19xf32>, vector<4x19xf32> -> vector<4x19xf32>
    %c0_86 = arith.constant 0 : index
    %c0_87 = arith.constant 0 : index
    %105 = vector.load %arg10[%c0_86, %c0_87] : memref<1x19xf32, #tpu.memory_space<vmem>>, vector<1x19xf32>
    %106 = vector.broadcast %105 : vector<1x19xf32> to vector<4x19xf32>
    %107 = arith.addf %104, %106 : vector<4x19xf32>
    %108 = vector.extract_strided_slice %107 {offsets = [0, 0], sizes = [4, 16], strides = [1, 1]} : vector<4x19xf32> to vector<4x16xf32>
    %109 = vector.extract_strided_slice %107 {offsets = [0, 16], sizes = [4, 3], strides = [1, 1]} : vector<4x19xf32> to vector<4x3xf32>
    %c0_88 = arith.constant 0 : index
    %c0_89 = arith.constant 0 : index
    %110 = vector.load %arg17[%c0_88, %c0_89] : memref<4x3xf32, #tpu.memory_space<vmem>>, vector<4x3xf32>
    tpu.vector_store %arg17[%c0_88, %c0_89], %109 {strides = array<i32>} : memref<4x3xf32, #tpu.memory_space<vmem>>, vector<4x3xf32>,
    %c0_90 = arith.constant 0 : index
    %c0_91 = arith.constant 0 : index
    %111 = vector.load %arg11[%c0_90, %c0_91] : memref<1x16xf32, #tpu.memory_space<vmem>>, vector<1x16xf32>
    %cst_92 = arith.constant dense<0.000000e+00> : vector<1x4xf32>
    %112 = tpu.matmul %111, %108, %cst_92 {dimension_numbers = #tpu.dot_dimension_numbers<[1], [1], [0], [0], [0, 0, 1, 0], [], []>} : vector<1x16xf32>, vector<4x16xf32>, vector<1x4xf32> -> vector<1x4xf32>
    %c0_93 = arith.constant 0 : index
    %c0_94 = arith.constant 0 : index
    %113 = vector.load %arg12[%c0_93, %c0_94] : memref<16x1xf32, #tpu.memory_space<vmem>>, vector<16x1xf32>
    %cst_95 = arith.constant dense<0.000000e+00> : vector<4x1xf32>
    %114 = tpu.matmul %108, %113, %cst_95 {dimension_numbers = #tpu.dot_dimension_numbers<[1], [0], [0], [1], [0, 0, 1, 1], [], []>} : vector<4x16xf32>, vector<16x1xf32>, vector<4x1xf32> -> vector<4x1xf32>
    %115 = vector.broadcast %114 : vector<4x1xf32> to vector<4x4xf32>
    %116 = vector.broadcast %112 : vector<1x4xf32> to vector<4x4xf32>
    %117 = arith.addf %115, %116 : vector<4x4xf32>
    %cst_96 = arith.constant 0.000000e+00 : f32
    %118 = vector.broadcast %cst_96 : f32 to vector<4x4xf32>
    %119 = arith.cmpf oge, %117, %118 : vector<4x4xf32>
    %cst_97 = arith.constant 0.00999999977 : f32
    %120 = vector.broadcast %cst_97 : f32 to vector<4x4xf32>
    %121 = arith.mulf %120, %117 : vector<4x4xf32>
    %122 = arith.select %119, %117, %121 : vector<4x4xi1>, vector<4x4xf32>
    %cst_98 = arith.constant dense<0xFF800000> : vector<4xf32>
    %123 = vector.multi_reduction <maximumf>, %122, %cst_98 [1] : vector<4x4xf32> to vector<4xf32>
    %124 = vector.shape_cast %123 : vector<4xf32> to vector<4x1xf32>
    %125 = vector.broadcast %124 : vector<4x1xf32> to vector<4x4xf32>
    %126 = arith.subf %122, %125 : vector<4x4xf32>
    %127 = math.exp %126 : vector<4x4xf32>
    %cst_99 = arith.constant dense<0.000000e+00> : vector<4xf32>
    %128 = vector.multi_reduction <add>, %127, %cst_99 [1] : vector<4x4xf32> to vector<4xf32>
    %129 = vector.shape_cast %128 : vector<4xf32> to vector<4x1xf32>
    %130 = tpu.reciprocal %129 {approx = true} : vector<4x1xf32> -> vector<4x1xf32>
    %131 = vector.broadcast %130 : vector<4x1xf32> to vector<4x4xf32>
    %132 = arith.mulf %127, %131 : vector<4x4xf32>
    %cst_100 = arith.constant dense<0.000000e+00> : vector<4x16xf32>
    %133 = tpu.matmul %132, %102, %cst_100 {dimension_numbers = #tpu.dot_dimension_numbers<[1], [0], [0], [1], [0, 0, 1, 1], [], []>} : vector<4x4xf32>, vector<4x16xf32>, vector<4x16xf32> -> vector<4x16xf32>
    %134 = arith.addf %133, %102 : vector<4x16xf32>
    %c0_101 = arith.constant 0 : index
    %c0_102 = arith.constant 0 : index
    %135 = vector.load %arg19[%c0_101, %c0_102] : memref<4x16xf32, #tpu.memory_space<vmem>>, vector<4x16xf32>
    tpu.vector_store %arg19[%c0_101, %c0_102], %134 {strides = array<i32>} : memref<4x16xf32, #tpu.memory_space<vmem>>, vector<4x16xf32>,
    %c0_103 = arith.constant 0 : index
    %c0_104 = arith.constant 0 : index
    %136 = vector.load %arg13[%c0_103, %c0_104] : memref<16x16xf32, #tpu.memory_space<vmem>>, vector<16x16xf32>
    %cst_105 = arith.constant dense<0.000000e+00> : vector<4x16xf32>
    %137 = tpu.matmul %134, %136, %cst_105 {dimension_numbers = #tpu.dot_dimension_numbers<[1], [0], [0], [1], [0, 0, 1, 1], [], []>} : vector<4x16xf32>, vector<16x16xf32>, vector<4x16xf32> -> vector<4x16xf32>
    %c0_106 = arith.constant 0 : index
    %c0_107 = arith.constant 0 : index
    %138 = vector.load %arg14[%c0_106, %c0_107] : memref<1x16xf32, #tpu.memory_space<vmem>>, vector<1x16xf32>
    %139 = vector.broadcast %138 : vector<1x16xf32> to vector<4x16xf32>
    %140 = arith.addf %137, %139 : vector<4x16xf32>
    %cst_108 = arith.constant 0.000000e+00 : f32
    %141 = vector.broadcast %cst_108 : f32 to vector<4x16xf32>
    %142 = arith.cmpf oge, %140, %141 : vector<4x16xf32>
    %cst_109 = arith.constant 0.00999999977 : f32
    %143 = vector.broadcast %cst_109 : f32 to vector<4x16xf32>
    %144 = arith.mulf %143, %140 : vector<4x16xf32>
    %145 = arith.select %142, %140, %144 : vector<4x16xi1>, vector<4x16xf32>
    %c0_110 = arith.constant 0 : index
    %c0_111 = arith.constant 0 : index
    %146 = vector.load %arg15[%c0_110, %c0_111] : memref<16x3xf32, #tpu.memory_space<vmem>>, vector<16x3xf32>
    %cst_112 = arith.constant dense<0.000000e+00> : vector<4x3xf32>
    %147 = tpu.matmul %145, %146, %cst_112 {dimension_numbers = #tpu.dot_dimension_numbers<[1], [0], [0], [1], [0, 0, 1, 1], [], []>} : vector<4x16xf32>, vector<16x3xf32>, vector<4x3xf32> -> vector<4x3xf32>
    %c0_113 = arith.constant 0 : index
    %c0_114 = arith.constant 0 : index
    %148 = vector.load %arg16[%c0_113, %c0_114] : memref<1x3xf32, #tpu.memory_space<vmem>>, vector<1x3xf32>
    %149 = vector.broadcast %148 : vector<1x3xf32> to vector<4x3xf32>
    %150 = arith.addf %147, %149 : vector<4x3xf32>
    %c0_115 = arith.constant 0 : index
    %c0_116 = arith.constant 0 : index
    %151 = vector.load %arg18[%c0_115, %c0_116] : memref<4x3xf32, #tpu.memory_space<vmem>>, vector<4x3xf32>
    tpu.vector_store %arg18[%c0_115, %c0_116], %150 {strides = array<i32>} : memref<4x3xf32, #tpu.memory_space<vmem>>, vector<4x3xf32>,
    return
  }
}

</mosaic_0001>

<llo_original>
// kernel: tpu_custom_call.1
$region0: #{tpu_custom_call.1}
  #allocation0 [shape = 'u32[]', space=smem, size = 0x4, offset = 0x4, fixed_abs, tag = 'smem constant byte address 0x4 - core index']
  #allocation1 [shape = 'u32[72,128]{1,0:T(1,128)}', space=vmem, size = 0x9000, scoped, tag = 'internal scratch']
  #allocation2 [shape = 'f32[64,128]{1,0:T(8,128)}', space=vmem, size = 0x8000, scoped, tag = 'scratch operand']
  %s0 = inlined_call_operand.vmem [shape: f32[64,128], index: 0, kind: input, shape index: {}]
  %s1 = inlined_call_operand.vmem [shape: s32[64,1], index: 1, kind: input, shape index: {}]
  %s2 = inlined_call_operand.hbm [shape: f32[4,64], index: 2, kind: input, shape index: {}]
  %s3 = inlined_call_operand.hbm [shape: f32[640,128], index: 3, kind: input, shape index: {}]
  %s4 = inlined_call_operand.vmem [shape: f32[1,128], index: 4, kind: input, shape index: {}]
  %s5 = inlined_call_operand.vmem [shape: f32[1,128], index: 5, kind: input, shape index: {}]
  %s6 = inlined_call_operand.hbm [shape: f32[640,128], index: 6, kind: input, shape index: {}]
  %s7 = inlined_call_operand.vmem [shape: f32[1,128], index: 7, kind: input, shape index: {}]
  %s8 = inlined_call_operand.vmem [shape: f32[1,128], index: 8, kind: input, shape index: {}]
  %s9 = inlined_call_operand.vmem [shape: f32[16,19], index: 9, kind: input, shape index: {}]
  %s10 = inlined_call_operand.vmem [shape: f32[1,19], index: 10, kind: input, shape index: {}]
  %s11 = inlined_call_operand.vmem [shape: f32[1,16], index: 11, kind: input, shape index: {}]
  %s12 = inlined_call_operand.vmem [shape: f32[16,1], index: 12, kind: input, shape index: {}]
  %s13 = inlined_call_operand.vmem [shape: f32[16,16], index: 13, kind: input, shape index: {}]
  %s14 = inlined_call_operand.vmem [shape: f32[1,16], index: 14, kind: input, shape index: {}]
  %s15 = inlined_call_operand.vmem [shape: f32[16,3], index: 15, kind: input, shape index: {}]
  %s16 = inlined_call_operand.vmem [shape: f32[1,3], index: 16, kind: input, shape index: {}]
  %s17 = inlined_call_operand.hbm [shape: f32[4,3], index: 17, kind: output, shape index: {0}]
  %s18 = inlined_call_operand.hbm [shape: f32[4,3], index: 18, kind: output, shape index: {1}]
  %s19 = inlined_call_operand.hbm [shape: f32[4,16], index: 19, kind: output, shape index: {2}]
  %20 = xla_tuple %s17, %s18, %s19
  %s21 = sld [smem:[#allocation0]]
  $region106: #{tpu_custom_call.1} parent=0
    _
  %s23 = ssub.s32 1, %s21
  %s24 = scalar_select 0, %s23, %s21
  $region1: #{tpu_custom_call.1} parent=0
    #allocation3 [shape = 'u8[2048]{0}', space=vmem, size = 0x800, scoped, tag = 'input window, operand 2, single buffered']
    #allocation4 [shape = 's32[1]{0}', space=sflag, size = 0x4, scoped, tag = 'scoped memory for tpu_custom_call.1']
    #allocation5 [shape = 's32[1]{0}', space=sflag, size = 0x4, scoped, tag = 'scoped memory for tpu_custom_call.1']
    #allocation6 [shape = 'u8[327680]{0}', space=vmem, size = 0x50000, scoped, tag = 'input window, operand 3, single buffered']
    #allocation7 [shape = 's32[1]{0}', space=sflag, size = 0x4, scoped, tag = 'scoped memory for tpu_custom_call.1']
    #allocation8 [shape = 'u8[327680]{0}', space=vmem, size = 0x50000, scoped, tag = 'input window, operand 6, single buffered']
    #allocation9 [shape = 'u8[2048]{0}', space=vmem, size = 0x800, scoped, tag = 'output window, operand 0, single buffered']
    #allocation10 [shape = 'u8[2048]{0}', space=vmem, size = 0x800, scoped, tag = 'output window, operand 1, single buffered']
    #allocation11 [shape = 's32[1]{0}', space=sflag, size = 0x4, scoped, tag = 'scoped memory for tpu_custom_call.1']
    #allocation12 [shape = 'u8[2048]{0}', space=vmem, size = 0x800, scoped, tag = 'output window, operand 2, single buffered']
    %25 = vsyncpa [#allocation4], 0
    %26 = vsyncpa [#allocation7], 0
    %27 = vsyncpa [#allocation5], 0
    %28 = vsyncpa [#allocation11], 0
    // Predicated region
    $region2: #{tpu_custom_call.1} parent=1 // pred_check
      _
    $region3: #{tpu_custom_call.1} parent=1 // pred_check_branch
      %30 = sbr.rel (0) target = $region5
    $region4: #{tpu_custom_call.1} parent=1 // pred_region
      _
    $region5: #{tpu_custom_call.1} parent=1 // pred_fallthru
      _
    // Predicated region
    $region6: #{tpu_custom_call.1} parent=1 // pred_check
      _
    $region7: #{tpu_custom_call.1} parent=1 // pred_check_branch
      %32 = sbr.rel (0) target = $region9
    $region8: #{tpu_custom_call.1} parent=1 // pred_region
      _
    $region9: #{tpu_custom_call.1} parent=1 // pred_fallthru
      _
    // Predicated region
    $region10: #{tpu_custom_call.1} parent=1 // pred_check
      _
    $region11: #{tpu_custom_call.1} parent=1 // pred_check_branch
      %34 = sbr.rel (0) target = $region13
    $region12: #{tpu_custom_call.1} parent=1 // pred_region
      %36 = vsyncadd [#allocation4], 0
      %s38 = sshll.u32 %s2, 4
      %s39 = int_to_ptr.hbm [resolvable:$true] %s38
      %s40 = sshll.u32 [#allocation3], 4
      %s41 = int_to_ptr.vmem [resolvable:$true] %s40
      %43 = dma.hbm_to_vmem [thread:$0]  %s39, 64, %s41, [#allocation4]
    $region13: #{tpu_custom_call.1} parent=1 // pred_fallthru
      _
    // Predicated region
    $region14: #{tpu_custom_call.1} parent=1 // pred_check
      _
    $region15: #{tpu_custom_call.1} parent=1 // pred_check_branch
      %45 = sbr.rel (0) target = $region17
    $region16: #{tpu_custom_call.1} parent=1 // pred_region
      %47 = vsyncadd [#allocation7], 0
      %s48 = sshll.u32 %s3, 4
      %s49 = int_to_ptr.hbm [resolvable:$true] %s48
      %s50 = sshll.u32 [#allocation6], 4
      %s51 = int_to_ptr.vmem [resolvable:$true] %s50
      %56 = dma.hbm_to_vmem [thread:$0]  %s49, 10240, %s51, [#allocation7], 128, 128, 8
    $region17: #{tpu_custom_call.1} parent=1 // pred_fallthru
      _
    // Predicated region
    $region18: #{tpu_custom_call.1} parent=1 // pred_check
      _
    $region19: #{tpu_custom_call.1} parent=1 // pred_check_branch
      %58 = sbr.rel (0) target = $region21
    $region20: #{tpu_custom_call.1} parent=1 // pred_region
      _
    $region21: #{tpu_custom_call.1} parent=1 // pred_fallthru
      _
    // Predicated region
    $region22: #{tpu_custom_call.1} parent=1 // pred_check
      _
    $region23: #{tpu_custom_call.1} parent=1 // pred_check_branch
      %60 = sbr.rel (0) target = $region25
    $region24: #{tpu_custom_call.1} parent=1 // pred_region
      _
    $region25: #{tpu_custom_call.1} parent=1 // pred_fallthru
      _
    // Predicated region
    $region26: #{tpu_custom_call.1} parent=1 // pred_check
      _
    $region27: #{tpu_custom_call.1} parent=1 // pred_check_branch
      %62 = sbr.rel (0) target = $region29
    $region28: #{tpu_custom_call.1} parent=1 // pred_region
      %64 = vsyncadd [#allocation7], 0
      %s65 = sshll.u32 %s6, 4
      %s66 = int_to_ptr.hbm [resolvable:$true] %s65
      %s67 = sshll.u32 [#allocation8], 4
      %s68 = int_to_ptr.vmem [resolvable:$true] %s67
      %73 = dma.hbm_to_vmem [thread:$0]  %s66, 10240, %s68, [#allocation7], 128, 128, 8
    $region29: #{tpu_custom_call.1} parent=1 // pred_fallthru
      _
    // Predicated region
    $region30: #{tpu_custom_call.1} parent=1 // pred_check
      _
    $region31: #{tpu_custom_call.1} parent=1 // pred_check_branch
      %75 = sbr.rel (0) target = $region33
    $region32: #{tpu_custom_call.1} parent=1 // pred_region
      _
    $region33: #{tpu_custom_call.1} parent=1 // pred_fallthru
      _
    // Predicated region
    $region34: #{tpu_custom_call.1} parent=1 // pred_check
      _
    $region35: #{tpu_custom_call.1} parent=1 // pred_check_branch
      %77 = sbr.rel (0) target = $region37
    $region36: #{tpu_custom_call.1} parent=1 // pred_region
      _
    $region37: #{tpu_custom_call.1} parent=1 // pred_fallthru
      _
    // Predicated region
    $region38: #{tpu_custom_call.1} parent=1 // pred_check
      _
    $region39: #{tpu_custom_call.1} parent=1 // pred_check_branch
      %79 = sbr.rel (0) target = $region41
    $region40: #{tpu_custom_call.1} parent=1 // pred_region
      _
    $region41: #{tpu_custom_call.1} parent=1 // pred_fallthru
      _
    // Predicated region
    $region42: #{tpu_custom_call.1} parent=1 // pred_check
      _
    $region43: #{tpu_custom_call.1} parent=1 // pred_check_branch
      %81 = sbr.rel (0) target = $region45
    $region44: #{tpu_custom_call.1} parent=1 // pred_region
      _
    $region45: #{tpu_custom_call.1} parent=1 // pred_fallthru
      _
    // Predicated region
    $region46: #{tpu_custom_call.1} parent=1 // pred_check
      _
    $region47: #{tpu_custom_call.1} parent=1 // pred_check_branch
      %83 = sbr.rel (0) target = $region49
    $region48: #{tpu_custom_call.1} parent=1 // pred_region
      _
    $region49: #{tpu_custom_call.1} parent=1 // pred_fallthru
      _
    // Predicated region
    $region50: #{tpu_custom_call.1} parent=1 // pred_check
      _
    $region51: #{tpu_custom_call.1} parent=1 // pred_check_branch
      %85 = sbr.rel (0) target = $region53
    $region52: #{tpu_custom_call.1} parent=1 // pred_region
      _
    $region53: #{tpu_custom_call.1} parent=1 // pred_fallthru
      _
    // Predicated region
    $region54: #{tpu_custom_call.1} parent=1 // pred_check
      _
    $region55: #{tpu_custom_call.1} parent=1 // pred_check_branch
      %87 = sbr.rel (0) target = $region57
    $region56: #{tpu_custom_call.1} parent=1 // pred_region
      _
    $region57: #{tpu_custom_call.1} parent=1 // pred_fallthru
      _
    // Predicated region
    $region58: #{tpu_custom_call.1} parent=1 // pred_check
      _
    $region59: #{tpu_custom_call.1} parent=1 // pred_check_branch
      %89 = sbr.rel (0) target = $region61
    $region60: #{tpu_custom_call.1} parent=1 // pred_region
      _
    $region61: #{tpu_custom_call.1} parent=1 // pred_fallthru
      _
    // Predicated region
    $region62: #{tpu_custom_call.1} parent=1 // pred_check
      _
    $region63: #{tpu_custom_call.1} parent=1 // pred_check_branch
      %91 = sbr.rel (0) target = $region65
    $region64: #{tpu_custom_call.1} parent=1 // pred_region
      _
    $region65: #{tpu_custom_call.1} parent=1 // pred_fallthru
      _
    // Predicated region
    $region66: #{tpu_custom_call.1} parent=1 // pred_check
      _
    $region67: #{tpu_custom_call.1} parent=1 // pred_check_branch
      %93 = sbr.rel (0) target = $region69
    $region68: #{tpu_custom_call.1} parent=1 // pred_region
      _
    $region69: #{tpu_custom_call.1} parent=1 // pred_fallthru
      _
    // Predicated region
    $region70: #{tpu_custom_call.1} parent=1 // pred_check
      _
    $region71: #{tpu_custom_call.1} parent=1 // pred_check_branch
      %95 = sbr.rel (0) target = $region73
    $region72: #{tpu_custom_call.1} parent=1 // pred_region
      %97 = dma.done [#allocation4], 64
    $region73: #{tpu_custom_call.1} parent=1 // pred_fallthru
      _
    // Predicated region
    $region74: #{tpu_custom_call.1} parent=1 // pred_check
      _
    $region75: #{tpu_custom_call.1} parent=1 // pred_check_branch
      %99 = sbr.rel (0) target = $region77
    $region76: #{tpu_custom_call.1} parent=1 // pred_region
      %101 = dma.done [#allocation7], 10240
    $region77: #{tpu_custom_call.1} parent=1 // pred_fallthru
      _
    // Predicated region
    $region78: #{tpu_custom_call.1} parent=1 // pred_check
      _
    $region79: #{tpu_custom_call.1} parent=1 // pred_check_branch
      %103 = sbr.rel (0) target = $region81
    $region80: #{tpu_custom_call.1} parent=1 // pred_region
      %105 = dma.done [#allocation7], 10240
    $region81: #{tpu_custom_call.1} parent=1 // pred_fallthru
      _
    %v106 = vld [vmem:[%s1] sm:$0xff]
    %v107 = vld [vmem:[%s1 + $0x8] sm:$0xff]
    %v108 = vld [vmem:[%s1 + $0x10] sm:$0xff]
    %v109 = vld [vmem:[%s1 + $0x18] sm:$0xff]
    %v110 = vld [vmem:[%s1 + $0x20] sm:$0xff]
    %v111 = vld [vmem:[%s1 + $0x28] sm:$0xff]
    %v112 = vld [vmem:[%s1 + $0x30] sm:$0xff]
    %v113 = vld [vmem:[%s1 + $0x38] sm:$0xff]
    %114 = vset.pattern.permute.xlu0 0
    %115 = vperm.xlu0 %114, %v106
    %v116 = vpop.permute.xlu0 %115
    %117 = vset.pattern.permute.xlu0 0
    %118 = vperm.xlu0 %117, %v107
    %v119 = vpop.permute.xlu0 %118
    %120 = vset.pattern.permute.xlu0 0
    %121 = vperm.xlu0 %120, %v108
    %v122 = vpop.permute.xlu0 %121
    %123 = vset.pattern.permute.xlu0 0
    %124 = vperm.xlu0 %123, %v109
    %v125 = vpop.permute.xlu0 %124
    %126 = vset.pattern.permute.xlu0 0
    %127 = vperm.xlu0 %126, %v110
    %v128 = vpop.permute.xlu0 %127
    %129 = vset.pattern.permute.xlu0 0
    %130 = vperm.xlu0 %129, %v111
    %v131 = vpop.permute.xlu0 %130
    %132 = vset.pattern.permute.xlu0 0
    %133 = vperm.xlu0 %132, %v112
    %v134 = vpop.permute.xlu0 %133
    %135 = vset.pattern.permute.xlu0 0
    %136 = vperm.xlu0 %135, %v113
    %v137 = vpop.permute.xlu0 %136
    %v138 = vld [vmem:[%s0] sm:$0xff]
    %v139 = vld [vmem:[%s0 + $0x8] sm:$0xff]
    %v140 = vld [vmem:[%s0 + $0x10] sm:$0xff]
    %v141 = vld [vmem:[%s0 + $0x18] sm:$0xff]
    %v142 = vld [vmem:[%s0 + $0x20] sm:$0xff]
    %v143 = vld [vmem:[%s0 + $0x28] sm:$0xff]
    %v144 = vld [vmem:[%s0 + $0x30] sm:$0xff]
    %v145 = vld [vmem:[%s0 + $0x38] sm:$0xff]
    %v146 = vrot.slane %v138, 6
    %v147 = vrot.slane %v139, 6
    %v148 = vrot.slane %v140, 6
    %v149 = vrot.slane %v141, 6
    %v150 = vrot.slane %v142, 6
    %v151 = vrot.slane %v143, 6
    %v152 = vrot.slane %v144, 6
    %v153 = vrot.slane %v145, 6
    %v154 = vlaneseq
    %v155 = vshrl.u32 %v154, 7
    %vm156 = vcmp.lt.s32.totalorder %v155, 2
    %v157 = vsel %vm156, %v152, %v153
    %v158 = vsel %vm156, %v151, %v152
    %v159 = vsel %vm156, %v150, %v151
    %v160 = vsel %vm156, %v149, %v150
    %v161 = vsel %vm156, %v148, %v149
    %v162 = vsel %vm156, %v147, %v148
    %v163 = vsel %vm156, %v146, %v147
    %v164 = vsel %vm156, %v153, %v146
    %vm165 = vcmp.ge.s32.totalorder %v116, 2
    %vm166 = vcmp.ge.s32.totalorder %v119, 2
    %vm167 = vcmp.ge.s32.totalorder %v122, 2
    %vm168 = vcmp.ge.s32.totalorder %v125, 2
    %vm169 = vcmp.ge.s32.totalorder %v128, 2
    %vm170 = vcmp.ge.s32.totalorder %v131, 2
    %vm171 = vcmp.ge.s32.totalorder %v134, 2
    %vm172 = vcmp.ge.s32.totalorder %v137, 2
    %v173 = vsel %vm165, %v164, 0.0
    %v174 = vsel %vm166, %v163, 0.0
    %v175 = vsel %vm167, %v162, 0.0
    %v176 = vsel %vm168, %v161, 0.0
    %v177 = vsel %vm169, %v160, 0.0
    %v178 = vsel %vm170, %v159, 0.0
    %v179 = vsel %vm171, %v158, 0.0
    %v180 = vsel %vm172, %v157, 0.0
    %v181 = vld [vmem:[#allocation6] sm:$0xff]
    %v182 = vld [vmem:[#allocation6 + $0x8] sm:$0xff]
    %v183 = vld [vmem:[#allocation6 + $0x10] sm:$0xff]
    %v184 = vld [vmem:[#allocation6 + $0x18] sm:$0xff]
    %v185 = vld [vmem:[#allocation6 + $0x20] sm:$0xff]
    %v186 = vld [vmem:[#allocation6 + $0x28] sm:$0xff]
    %v187 = vld [vmem:[#allocation6 + $0x30] sm:$0xff]
    %v188 = vld [vmem:[#allocation6 + $0x38] sm:$0xff]
    %v189 = vld [vmem:[#allocation6 + $0x40] sm:$0xff]
    %v190 = vld [vmem:[#allocation6 + $0x48] sm:$0xff]
    %v191 = vld [vmem:[#allocation6 + $0x50] sm:$0xff]
    %v192 = vld [vmem:[#allocation6 + $0x58] sm:$0xff]
    %v193 = vld [vmem:[#allocation6 + $0x60] sm:$0xff]
    %v194 = vld [vmem:[#allocation6 + $0x68] sm:$0xff]
    %v195 = vld [vmem:[#allocation6 + $0x70] sm:$0xff]
    %v196 = vld [vmem:[#allocation6 + $0x78] sm:$0xff]
    %v197 = vrot.slane %v138, 7
    %v198 = vrot.slane %v139, 7
    %v199 = vrot.slane %v140, 7
    %v200 = vrot.slane %v141, 7
    %v201 = vrot.slane %v142, 7
    %v202 = vrot.slane %v143, 7
    %v203 = vrot.slane %v144, 7
    %v204 = vrot.slane %v145, 7
    %vm205 = vcmp.lt.s32.totalorder %v155, 1
    %v206 = vsel %vm205, %v203, %v204
    %v207 = vsel %vm205, %v202, %v203
    %v208 = vsel %vm205, %v201, %v202
    %v209 = vsel %vm205, %v200, %v201
    %v210 = vsel %vm205, %v199, %v200
    %v211 = vsel %vm205, %v198, %v199
    %v212 = vsel %vm205, %v197, %v198
    %v213 = vsel %vm205, %v204, %v197
    %vm214 = vcmp.ge.s32.totalorder %v116, 1
    %vm215 = vcmp.ge.s32.totalorder %v119, 1
    %vm216 = vcmp.ge.s32.totalorder %v122, 1
    %vm217 = vcmp.ge.s32.totalorder %v125, 1
    %vm218 = vcmp.ge.s32.totalorder %v128, 1
    %vm219 = vcmp.ge.s32.totalorder %v131, 1
    %vm220 = vcmp.ge.s32.totalorder %v134, 1
    %vm221 = vcmp.ge.s32.totalorder %v137, 1
    %v222 = vsel %vm214, %v213, 0.0
    %v223 = vsel %vm215, %v212, 0.0
    %v224 = vsel %vm216, %v211, 0.0
    %v225 = vsel %vm217, %v210, 0.0
    %v226 = vsel %vm218, %v209, 0.0
    %v227 = vsel %vm219, %v208, 0.0
    %v228 = vsel %vm220, %v207, 0.0
    %v229 = vsel %vm221, %v206, 0.0
    %v230 = vld [vmem:[#allocation6 + $0x80] sm:$0xff]
    %v231 = vld [vmem:[#allocation6 + $0x88] sm:$0xff]
    %v232 = vld [vmem:[#allocation6 + $0x90] sm:$0xff]
    %v233 = vld [vmem:[#allocation6 + $0x98] sm:$0xff]
    %v234 = vld [vmem:[#allocation6 + $0xa0] sm:$0xff]
    %v235 = vld [vmem:[#allocation6 + $0xa8] sm:$0xff]
    %v236 = vld [vmem:[#allocation6 + $0xb0] sm:$0xff]
    %v237 = vld [vmem:[#allocation6 + $0xb8] sm:$0xff]
    %v238 = vld [vmem:[#allocation6 + $0xc0] sm:$0xff]
    %v239 = vld [vmem:[#allocation6 + $0xc8] sm:$0xff]
    %v240 = vld [vmem:[#allocation6 + $0xd0] sm:$0xff]
    %v241 = vld [vmem:[#allocation6 + $0xd8] sm:$0xff]
    %v242 = vld [vmem:[#allocation6 + $0xe0] sm:$0xff]
    %v243 = vld [vmem:[#allocation6 + $0xe8] sm:$0xff]
    %v244 = vld [vmem:[#allocation6 + $0xf0] sm:$0xff]
    %v245 = vld [vmem:[#allocation6 + $0xf8] sm:$0xff]
    %246 = vmatpush.msra.mxu0 %v245
    %247 = vmatpush.msra.mxu0 %v244
    %248 = vmatpush.msra.mxu0 %v243
    %249 = vmatpush.msra.mxu0 %v242
    %250 = vmatpush.msra.mxu0 %v241
    %251 = vmatpush.msra.mxu0 %v240
    %252 = vmatpush.msra.mxu0 %v239
    %253 = vmatpush.msra.mxu0 %v238
    %254 = vmatpush.msra.mxu0 %v237
    %255 = vmatpush.msra.mxu0 %v236
    %256 = vmatpush.msra.mxu0 %v235
    %257 = vmatpush.msra.mxu0 %v234
    %258 = vmatpush.msra.mxu0 %v233
    %259 = vmatpush.msra.mxu0 %v232
    %260 = vmatpush.msra.mxu0 %v231
    %261 = vmatpush.msra.mxu0 %v230
    %262 = vmatmul.f32.gmra.mxu0 %v222
    %v263 = vpop.f32.mrf.mxu0
    %v264 = vadd.f32 0.0, %v263
    %265 = vmatmul.f32.gmra.mxu0 %v223
    %v266 = vpop.f32.mrf.mxu0
    %v267 = vadd.f32 0.0, %v266
    %268 = vmatmul.f32.gmra.mxu0 %v224
    %v269 = vpop.f32.mrf.mxu0
    %v270 = vadd.f32 0.0, %v269
    %271 = vmatmul.f32.gmra.mxu0 %v225
    %v272 = vpop.f32.mrf.mxu0
    %v273 = vadd.f32 0.0, %v272
    %274 = vmatmul.f32.gmra.mxu0 %v226
    %v275 = vpop.f32.mrf.mxu0
    %v276 = vadd.f32 0.0, %v275
    %277 = vmatmul.f32.gmra.mxu0 %v227
    %v278 = vpop.f32.mrf.mxu0
    %v279 = vadd.f32 0.0, %v278
    %280 = vmatmul.f32.gmra.mxu0 %v228
    %v281 = vpop.f32.mrf.mxu0
    %v282 = vadd.f32 0.0, %v281
    %283 = vmatmul.f32.gmra.mxu0 %v229
    %v284 = vpop.f32.mrf.mxu0
    %v285 = vadd.f32 0.0, %v284
    %286 = vdwg.mxu0
    %287 = vmatpush.msra.mxu0 %v196
    %288 = vmatpush.msra.mxu0 %v195
    %289 = vmatpush.msra.mxu0 %v194
    %290 = vmatpush.msra.mxu0 %v193
    %291 = vmatpush.msra.mxu0 %v192
    %292 = vmatpush.msra.mxu0 %v191
    %293 = vmatpush.msra.mxu0 %v190
    %294 = vmatpush.msra.mxu0 %v189
    %295 = vmatpush.msra.mxu0 %v188
    %296 = vmatpush.msra.mxu0 %v187
    %297 = vmatpush.msra.mxu0 %v186
    %298 = vmatpush.msra.mxu0 %v185
    %299 = vmatpush.msra.mxu0 %v184
    %300 = vmatpush.msra.mxu0 %v183
    %301 = vmatpush.msra.mxu0 %v182
    %302 = vmatpush.msra.mxu0 %v181
    %303 = vmatmul.f32.gmra.mxu0 %v173
    %v304 = vpop.f32.mrf.mxu0
    %v305 = vadd.f32 %v264, %v304
    %306 = vmatmul.f32.gmra.mxu0 %v174
    %v307 = vpop.f32.mrf.mxu0
    %v308 = vadd.f32 %v267, %v307
    %309 = vmatmul.f32.gmra.mxu0 %v175
    %v310 = vpop.f32.mrf.mxu0
    %v311 = vadd.f32 %v270, %v310
    %312 = vmatmul.f32.gmra.mxu0 %v176
    %v313 = vpop.f32.mrf.mxu0
    %v314 = vadd.f32 %v273, %v313
    %315 = vmatmul.f32.gmra.mxu0 %v177
    %v316 = vpop.f32.mrf.mxu0
    %v317 = vadd.f32 %v276, %v316
    %318 = vmatmul.f32.gmra.mxu0 %v178
    %v319 = vpop.f32.mrf.mxu0
    %v320 = vadd.f32 %v279, %v319
    %321 = vmatmul.f32.gmra.mxu0 %v179
    %v322 = vpop.f32.mrf.mxu0
    %v323 = vadd.f32 %v282, %v322
    %324 = vmatmul.f32.gmra.mxu0 %v180
    %v325 = vpop.f32.mrf.mxu0
    %v326 = vadd.f32 %v285, %v325
    %327 = vdwg.mxu0
    %v328 = vld [vmem:[#allocation6 + $0x100] sm:$0xff]
    %v329 = vld [vmem:[#allocation6 + $0x108] sm:$0xff]
    %v330 = vld [vmem:[#allocation6 + $0x110] sm:$0xff]
    %v331 = vld [vmem:[#allocation6 + $0x118] sm:$0xff]
    %v332 = vld [vmem:[#allocation6 + $0x120] sm:$0xff]
    %v333 = vld [vmem:[#allocation6 + $0x128] sm:$0xff]
    %v334 = vld [vmem:[#allocation6 + $0x130] sm:$0xff]
    %v335 = vld [vmem:[#allocation6 + $0x138] sm:$0xff]
    %v336 = vld [vmem:[#allocation6 + $0x140] sm:$0xff]
    %v337 = vld [vmem:[#allocation6 + $0x148] sm:$0xff]
    %v338 = vld [vmem:[#allocation6 + $0x150] sm:$0xff]
    %v339 = vld [vmem:[#allocation6 + $0x158] sm:$0xff]
    %v340 = vld [vmem:[#allocation6 + $0x160] sm:$0xff]
    %v341 = vld [vmem:[#allocation6 + $0x168] sm:$0xff]
    %v342 = vld [vmem:[#allocation6 + $0x170] sm:$0xff]
    %v343 = vld [vmem:[#allocation6 + $0x178] sm:$0xff]
    %344 = vmatpush.msra.mxu0 %v343
    %345 = vmatpush.msra.mxu0 %v342
    %346 = vmatpush.msra.mxu0 %v341
    %347 = vmatpush.msra.mxu0 %v340
    %348 = vmatpush.msra.mxu0 %v339
    %349 = vmatpush.msra.mxu0 %v338
    %350 = vmatpush.msra.mxu0 %v337
    %351 = vmatpush.msra.mxu0 %v336
    %352 = vmatpush.msra.mxu0 %v335
    %353 = vmatpush.msra.mxu0 %v334
    %354 = vmatpush.msra.mxu0 %v333
    %355 = vmatpush.msra.mxu0 %v332
    %356 = vmatpush.msra.mxu0 %v331
    %357 = vmatpush.msra.mxu0 %v330
    %358 = vmatpush.msra.mxu0 %v329
    %359 = vmatpush.msra.mxu0 %v328
    %360 = vmatmul.f32.gmra.mxu0 %v138
    %v361 = vpop.f32.mrf.mxu0
    %v362 = vadd.f32 0.0, %v361
    %363 = vmatmul.f32.gmra.mxu0 %v139
    %v364 = vpop.f32.mrf.mxu0
    %v365 = vadd.f32 0.0, %v364
    %366 = vmatmul.f32.gmra.mxu0 %v140
    %v367 = vpop.f32.mrf.mxu0
    %v368 = vadd.f32 0.0, %v367
    %369 = vmatmul.f32.gmra.mxu0 %v141
    %v370 = vpop.f32.mrf.mxu0
    %v371 = vadd.f32 0.0, %v370
    %372 = vmatmul.f32.gmra.mxu0 %v142
    %v373 = vpop.f32.mrf.mxu0
    %v374 = vadd.f32 0.0, %v373
    %375 = vmatmul.f32.gmra.mxu0 %v143
    %v376 = vpop.f32.mrf.mxu0
    %v377 = vadd.f32 0.0, %v376
    %378 = vmatmul.f32.gmra.mxu0 %v144
    %v379 = vpop.f32.mrf.mxu0
    %v380 = vadd.f32 0.0, %v379
    %381 = vmatmul.f32.gmra.mxu0 %v145
    %v382 = vpop.f32.mrf.mxu0
    %v383 = vadd.f32 0.0, %v382
    %384 = vdwg.mxu0
    %v385 = vadd.f32 %v305, %v362
    %v386 = vadd.f32 %v308, %v365
    %v387 = vadd.f32 %v311, %v368
    %v388 = vadd.f32 %v314, %v371
    %v389 = vadd.f32 %v317, %v374
    %v390 = vadd.f32 %v320, %v377
    %v391 = vadd.f32 %v323, %v380
    %v392 = vadd.f32 %v326, %v383
    %v393 = vrot.slane %v138, 1
    %v394 = vrot.slane %v139, 1
    %v395 = vrot.slane %v140, 1
    %v396 = vrot.slane %v141, 1
    %v397 = vrot.slane %v142, 1
    %v398 = vrot.slane %v143, 1
    %v399 = vrot.slane %v144, 1
    %v400 = vrot.slane %v145, 1
    %vm401 = vcmp.lt.s32.totalorder %v155, 7
    %v402 = vsel %vm401, %v399, %v400
    %v403 = vsel %vm401, %v398, %v399
    %v404 = vsel %vm401, %v397, %v398
    %v405 = vsel %vm401, %v396, %v397
    %v406 = vsel %vm401, %v395, %v396
    %v407 = vsel %vm401, %v394, %v395
    %v408 = vsel %vm401, %v393, %v394
    %v409 = vsel %vm401, %v400, %v393
    %vm410 = vcmp.lt.s32.totalorder %v116, 15
    %vm411 = vcmp.lt.s32.totalorder %v119, 15
    %vm412 = vcmp.lt.s32.totalorder %v122, 15
    %vm413 = vcmp.lt.s32.totalorder %v125, 15
    %vm414 = vcmp.lt.s32.totalorder %v128, 15
    %vm415 = vcmp.lt.s32.totalorder %v131, 15
    %vm416 = vcmp.lt.s32.totalorder %v134, 15
    %vm417 = vcmp.lt.s32.totalorder %v137, 15
    %v418 = vsel %vm410, %v408, 0.0
    %v419 = vsel %vm411, %v407, 0.0
    %v420 = vsel %vm412, %v406, 0.0
    %v421 = vsel %vm413, %v405, 0.0
    %v422 = vsel %vm414, %v404, 0.0
    %v423 = vsel %vm415, %v403, 0.0
    %v424 = vsel %vm416, %v402, 0.0
    %v425 = vsel %vm417, %v409, 0.0
    %v426 = vld [vmem:[#allocation6 + $0x180] sm:$0xff]
    %v427 = vld [vmem:[#allocation6 + $0x188] sm:$0xff]
    %v428 = vld [vmem:[#allocation6 + $0x190] sm:$0xff]
    %v429 = vld [vmem:[#allocation6 + $0x198] sm:$0xff]
    %v430 = vld [vmem:[#allocation6 + $0x1a0] sm:$0xff]
    %v431 = vld [vmem:[#allocation6 + $0x1a8] sm:$0xff]
    %v432 = vld [vmem:[#allocation6 + $0x1b0] sm:$0xff]
    %v433 = vld [vmem:[#allocation6 + $0x1b8] sm:$0xff]
    %v434 = vld [vmem:[#allocation6 + $0x1c0] sm:$0xff]
    %v435 = vld [vmem:[#allocation6 + $0x1c8] sm:$0xff]
    %v436 = vld [vmem:[#allocation6 + $0x1d0] sm:$0xff]
    %v437 = vld [vmem:[#allocation6 + $0x1d8] sm:$0xff]
    %v438 = vld [vmem:[#allocation6 + $0x1e0] sm:$0xff]
    %v439 = vld [vmem:[#allocation6 + $0x1e8] sm:$0xff]
    %v440 = vld [vmem:[#allocation6 + $0x1f0] sm:$0xff]
    %v441 = vld [vmem:[#allocation6 + $0x1f8] sm:$0xff]
    %442 = vmatpush.msra.mxu0 %v441
    %443 = vmatpush.msra.mxu0 %v440
    %444 = vmatpush.msra.mxu0 %v439
    %445 = vmatpush.msra.mxu0 %v438
    %446 = vmatpush.msra.mxu0 %v437
    %447 = vmatpush.msra.mxu0 %v436
    %448 = vmatpush.msra.mxu0 %v435
    %449 = vmatpush.msra.mxu0 %v434
    %450 = vmatpush.msra.mxu0 %v433
    %451 = vmatpush.msra.mxu0 %v432
    %452 = vmatpush.msra.mxu0 %v431
    %453 = vmatpush.msra.mxu0 %v430
    %454 = vmatpush.msra.mxu0 %v429
    %455 = vmatpush.msra.mxu0 %v428
    %456 = vmatpush.msra.mxu0 %v427
    %457 = vmatpush.msra.mxu0 %v426
    %458 = vmatmul.f32.gmra.mxu0 %v418
    %v459 = vpop.f32.mrf.mxu0
    %v460 = vadd.f32 0.0, %v459
    %461 = vmatmul.f32.gmra.mxu0 %v419
    %v462 = vpop.f32.mrf.mxu0
    %v463 = vadd.f32 0.0, %v462
    %464 = vmatmul.f32.gmra.mxu0 %v420
    %v465 = vpop.f32.mrf.mxu0
    %v466 = vadd.f32 0.0, %v465
    %467 = vmatmul.f32.gmra.mxu0 %v421
    %v468 = vpop.f32.mrf.mxu0
    %v469 = vadd.f32 0.0, %v468
    %470 = vmatmul.f32.gmra.mxu0 %v422
    %v471 = vpop.f32.mrf.mxu0
    %v472 = vadd.f32 0.0, %v471
    %473 = vmatmul.f32.gmra.mxu0 %v423
    %v474 = vpop.f32.mrf.mxu0
    %v475 = vadd.f32 0.0, %v474
    %476 = vmatmul.f32.gmra.mxu0 %v424
    %v477 = vpop.f32.mrf.mxu0
    %v478 = vadd.f32 0.0, %v477
    %479 = vmatmul.f32.gmra.mxu0 %v425
    %v480 = vpop.f32.mrf.mxu0
    %v481 = vadd.f32 0.0, %v480
    %482 = vdwg.mxu0
    %v483 = vadd.f32 %v385, %v460
    %v484 = vadd.f32 %v386, %v463
    %v485 = vadd.f32 %v387, %v466
    %v486 = vadd.f32 %v388, %v469
    %v487 = vadd.f32 %v389, %v472
    %v488 = vadd.f32 %v390, %v475
    %v489 = vadd.f32 %v391, %v478
    %v490 = vadd.f32 %v392, %v481
    %v491 = vrot.slane %v138, 2
    %v492 = vrot.slane %v139, 2
    %v493 = vrot.slane %v140, 2
    %v494 = vrot.slane %v141, 2
    %v495 = vrot.slane %v142, 2
    %v496 = vrot.slane %v143, 2
    %v497 = vrot.slane %v144, 2
    %v498 = vrot.slane %v145, 2
    %vm499 = vcmp.lt.s32.totalorder %v155, 6
    %v500 = vsel %vm499, %v497, %v498
    %v501 = vsel %vm499, %v496, %v497
    %v502 = vsel %vm499, %v495, %v496
    %v503 = vsel %vm499, %v494, %v495
    %v504 = vsel %vm499, %v493, %v494
    %v505 = vsel %vm499, %v492, %v493
    %v506 = vsel %vm499, %v491, %v492
    %v507 = vsel %vm499, %v498, %v491
    %vm508 = vcmp.lt.s32.totalorder %v116, 14
    %vm509 = vcmp.lt.s32.totalorder %v119, 14
    %vm510 = vcmp.lt.s32.totalorder %v122, 14
    %vm511 = vcmp.lt.s32.totalorder %v125, 14
    %vm512 = vcmp.lt.s32.totalorder %v128, 14
    %vm513 = vcmp.lt.s32.totalorder %v131, 14
    %vm514 = vcmp.lt.s32.totalorder %v134, 14
    %vm515 = vcmp.lt.s32.totalorder %v137, 14
    %v516 = vsel %vm508, %v506, 0.0
    %v517 = vsel %vm509, %v505, 0.0
    %v518 = vsel %vm510, %v504, 0.0
    %v519 = vsel %vm511, %v503, 0.0
    %v520 = vsel %vm512, %v502, 0.0
    %v521 = vsel %vm513, %v501, 0.0
    %v522 = vsel %vm514, %v500, 0.0
    %v523 = vsel %vm515, %v507, 0.0
    %v524 = vld [vmem:[#allocation6 + $0x200] sm:$0xff]
    %v525 = vld [vmem:[#allocation6 + $0x208] sm:$0xff]
    %v526 = vld [vmem:[#allocation6 + $0x210] sm:$0xff]
    %v527 = vld [vmem:[#allocation6 + $0x218] sm:$0xff]
    %v528 = vld [vmem:[#allocation6 + $0x220] sm:$0xff]
    %v529 = vld [vmem:[#allocation6 + $0x228] sm:$0xff]
    %v530 = vld [vmem:[#allocation6 + $0x230] sm:$0xff]
    %v531 = vld [vmem:[#allocation6 + $0x238] sm:$0xff]
    %v532 = vld [vmem:[#allocation6 + $0x240] sm:$0xff]
    %v533 = vld [vmem:[#allocation6 + $0x248] sm:$0xff]
    %v534 = vld [vmem:[#allocation6 + $0x250] sm:$0xff]
    %v535 = vld [vmem:[#allocation6 + $0x258] sm:$0xff]
    %v536 = vld [vmem:[#allocation6 + $0x260] sm:$0xff]
    %v537 = vld [vmem:[#allocation6 + $0x268] sm:$0xff]
    %v538 = vld [vmem:[#allocation6 + $0x270] sm:$0xff]
    %v539 = vld [vmem:[#allocation6 + $0x278] sm:$0xff]
    %540 = vmatpush.msra.mxu0 %v539
    %541 = vmatpush.msra.mxu0 %v538
    %542 = vmatpush.msra.mxu0 %v537
    %543 = vmatpush.msra.mxu0 %v536
    %544 = vmatpush.msra.mxu0 %v535
    %545 = vmatpush.msra.mxu0 %v534
    %546 = vmatpush.msra.mxu0 %v533
    %547 = vmatpush.msra.mxu0 %v532
    %548 = vmatpush.msra.mxu0 %v531
    %549 = vmatpush.msra.mxu0 %v530
    %550 = vmatpush.msra.mxu0 %v529
    %551 = vmatpush.msra.mxu0 %v528
    %552 = vmatpush.msra.mxu0 %v527
    %553 = vmatpush.msra.mxu0 %v526
    %554 = vmatpush.msra.mxu0 %v525
    %555 = vmatpush.msra.mxu0 %v524
    %556 = vmatmul.f32.gmra.mxu0 %v516
    %v557 = vpop.f32.mrf.mxu0
    %v558 = vadd.f32 0.0, %v557
    %559 = vmatmul.f32.gmra.mxu0 %v517
    %v560 = vpop.f32.mrf.mxu0
    %v561 = vadd.f32 0.0, %v560
    %562 = vmatmul.f32.gmra.mxu0 %v518
    %v563 = vpop.f32.mrf.mxu0
    %v564 = vadd.f32 0.0, %v563
    %565 = vmatmul.f32.gmra.mxu0 %v519
    %v566 = vpop.f32.mrf.mxu0
    %v567 = vadd.f32 0.0, %v566
    %568 = vmatmul.f32.gmra.mxu0 %v520
    %v569 = vpop.f32.mrf.mxu0
    %v570 = vadd.f32 0.0, %v569
    %571 = vmatmul.f32.gmra.mxu0 %v521
    %v572 = vpop.f32.mrf.mxu0
    %v573 = vadd.f32 0.0, %v572
    %574 = vmatmul.f32.gmra.mxu0 %v522
    %v575 = vpop.f32.mrf.mxu0
    %v576 = vadd.f32 0.0, %v575
    %577 = vmatmul.f32.gmra.mxu0 %v523
    %v578 = vpop.f32.mrf.mxu0
    %v579 = vadd.f32 0.0, %v578
    %580 = vdwg.mxu0
    %v581 = vadd.f32 %v483, %v558
    %v582 = vadd.f32 %v484, %v561
    %v583 = vadd.f32 %v485, %v564
    %v584 = vadd.f32 %v486, %v567
    %v585 = vadd.f32 %v487, %v570
    %v586 = vadd.f32 %v488, %v573
    %v587 = vadd.f32 %v489, %v576
    %v588 = vadd.f32 %v490, %v579
    %v589 = vld [vmem:[%s4] sm:$0x1]
    %v591 = vperm.slane %v589, 0
    %v593 = vmul.f32 %v581, %v591
    %v594 = vmul.f32 %v582, %v591
    %v595 = vmul.f32 %v583, %v591
    %v596 = vmul.f32 %v584, %v591
    %v597 = vmul.f32 %v585, %v591
    %v598 = vmul.f32 %v586, %v591
    %v599 = vmul.f32 %v587, %v591
    %v600 = vmul.f32 %v588, %v591
    %v601 = vld [vmem:[%s5] sm:$0x1]
    %v603 = vperm.slane %v601, 0
    %v605 = vadd.f32 %v593, %v603
    %v606 = vadd.f32 %v594, %v603
    %v607 = vadd.f32 %v595, %v603
    %v608 = vadd.f32 %v596, %v603
    %v609 = vadd.f32 %v597, %v603
    %v610 = vadd.f32 %v598, %v603
    %v611 = vadd.f32 %v599, %v603
    %v612 = vadd.f32 %v600, %v603
    %v613 = vmax.f32 %v605, 0.0
    %v614 = vmax.f32 %v606, 0.0
    %v615 = vmax.f32 %v607, 0.0
    %v616 = vmax.f32 %v608, 0.0
    %v617 = vmax.f32 %v609, 0.0
    %v618 = vmax.f32 %v610, 0.0
    %v619 = vmax.f32 %v611, 0.0
    %v620 = vmax.f32 %v612, 0.0
    %621 = vst [vmem:[#allocation2] sm:$0xff] %v613
    %622 = vst [vmem:[#allocation2 + $0x8] sm:$0xff] %v614
    %623 = vst [vmem:[#allocation2 + $0x10] sm:$0xff] %v615
    %624 = vst [vmem:[#allocation2 + $0x18] sm:$0xff] %v616
    %625 = vst [vmem:[#allocation2 + $0x20] sm:$0xff] %v617
    %626 = vst [vmem:[#allocation2 + $0x28] sm:$0xff] %v618
    %627 = vst [vmem:[#allocation2 + $0x30] sm:$0xff] %v619
    %628 = vst [vmem:[#allocation2 + $0x38] sm:$0xff] %v620
    %v629 = vld [vmem:[#allocation2] sm:$0xff]
    %v630 = vld [vmem:[#allocation2 + $0x8] sm:$0xff]
    %v631 = vld [vmem:[#allocation2 + $0x10] sm:$0xff]
    %v632 = vld [vmem:[#allocation2 + $0x18] sm:$0xff]
    %v633 = vld [vmem:[#allocation2 + $0x20] sm:$0xff]
    %v634 = vld [vmem:[#allocation2 + $0x28] sm:$0xff]
    %v635 = vld [vmem:[#allocation2 + $0x30] sm:$0xff]
    %v636 = vld [vmem:[#allocation2 + $0x38] sm:$0xff]
    %v637 = vrot.slane %v629, 6
    %v638 = vrot.slane %v630, 6
    %v639 = vrot.slane %v631, 6
    %v640 = vrot.slane %v632, 6
    %v641 = vrot.slane %v633, 6
    %v642 = vrot.slane %v634, 6
    %v643 = vrot.slane %v635, 6
    %v644 = vrot.slane %v636, 6
    %v645 = vsel %vm156, %v643, %v644
    %v646 = vsel %vm156, %v642, %v643
    %v647 = vsel %vm156, %v641, %v642
    %v648 = vsel %vm156, %v640, %v641
    %v649 = vsel %vm156, %v639, %v640
    %v650 = vsel %vm156, %v638, %v639
    %v651 = vsel %vm156, %v637, %v638
    %v652 = vsel %vm156, %v644, %v637
    %v653 = vsel %vm165, %v652, 0.0
    %v654 = vsel %vm166, %v651, 0.0
    %v655 = vsel %vm167, %v650, 0.0
    %v656 = vsel %vm168, %v649, 0.0
    %v657 = vsel %vm169, %v648, 0.0
    %v658 = vsel %vm170, %v647, 0.0
    %v659 = vsel %vm171, %v646, 0.0
    %v660 = vsel %vm172, %v645, 0.0
    %v661 = vld [vmem:[#allocation8] sm:$0xff]
    %v662 = vld [vmem:[#allocation8 + $0x8] sm:$0xff]
    %v663 = vld [vmem:[#allocation8 + $0x10] sm:$0xff]
    %v664 = vld [vmem:[#allocation8 + $0x18] sm:$0xff]
    %v665 = vld [vmem:[#allocation8 + $0x20] sm:$0xff]
    %v666 = vld [vmem:[#allocation8 + $0x28] sm:$0xff]
    %v667 = vld [vmem:[#allocation8 + $0x30] sm:$0xff]
    %v668 = vld [vmem:[#allocation8 + $0x38] sm:$0xff]
    %v669 = vld [vmem:[#allocation8 + $0x40] sm:$0xff]
    %v670 = vld [vmem:[#allocation8 + $0x48] sm:$0xff]
    %v671 = vld [vmem:[#allocation8 + $0x50] sm:$0xff]
    %v672 = vld [vmem:[#allocation8 + $0x58] sm:$0xff]
    %v673 = vld [vmem:[#allocation8 + $0x60] sm:$0xff]
    %v674 = vld [vmem:[#allocation8 + $0x68] sm:$0xff]
    %v675 = vld [vmem:[#allocation8 + $0x70] sm:$0xff]
    %v676 = vld [vmem:[#allocation8 + $0x78] sm:$0xff]
    %v677 = vrot.slane %v629, 7
    %v678 = vrot.slane %v630, 7
    %v679 = vrot.slane %v631, 7
    %v680 = vrot.slane %v632, 7
    %v681 = vrot.slane %v633, 7
    %v682 = vrot.slane %v634, 7
    %v683 = vrot.slane %v635, 7
    %v684 = vrot.slane %v636, 7
    %v685 = vsel %vm205, %v683, %v684
    %v686 = vsel %vm205, %v682, %v683
    %v687 = vsel %vm205, %v681, %v682
    %v688 = vsel %vm205, %v680, %v681
    %v689 = vsel %vm205, %v679, %v680
    %v690 = vsel %vm205, %v678, %v679
    %v691 = vsel %vm205, %v677, %v678
    %v692 = vsel %vm205, %v684, %v677
    %v693 = vsel %vm214, %v692, 0.0
    %v694 = vsel %vm215, %v691, 0.0
    %v695 = vsel %vm216, %v690, 0.0
    %v696 = vsel %vm217, %v689, 0.0
    %v697 = vsel %vm218, %v688, 0.0
    %v698 = vsel %vm219, %v687, 0.0
    %v699 = vsel %vm220, %v686, 0.0
    %v700 = vsel %vm221, %v685, 0.0
    %v701 = vld [vmem:[#allocation8 + $0x80] sm:$0xff]
    %v702 = vld [vmem:[#allocation8 + $0x88] sm:$0xff]
    %v703 = vld [vmem:[#allocation8 + $0x90] sm:$0xff]
    %v704 = vld [vmem:[#allocation8 + $0x98] sm:$0xff]
    %v705 = vld [vmem:[#allocation8 + $0xa0] sm:$0xff]
    %v706 = vld [vmem:[#allocation8 + $0xa8] sm:$0xff]
    %v707 = vld [vmem:[#allocation8 + $0xb0] sm:$0xff]
    %v708 = vld [vmem:[#allocation8 + $0xb8] sm:$0xff]
    %v709 = vld [vmem:[#allocation8 + $0xc0] sm:$0xff]
    %v710 = vld [vmem:[#allocation8 + $0xc8] sm:$0xff]
    %v711 = vld [vmem:[#allocation8 + $0xd0] sm:$0xff]
    %v712 = vld [vmem:[#allocation8 + $0xd8] sm:$0xff]
    %v713 = vld [vmem:[#allocation8 + $0xe0] sm:$0xff]
    %v714 = vld [vmem:[#allocation8 + $0xe8] sm:$0xff]
    %v715 = vld [vmem:[#allocation8 + $0xf0] sm:$0xff]
    %v716 = vld [vmem:[#allocation8 + $0xf8] sm:$0xff]
    %717 = vmatpush.msra.mxu0 %v716
    %718 = vmatpush.msra.mxu0 %v715
    %719 = vmatpush.msra.mxu0 %v714
    %720 = vmatpush.msra.mxu0 %v713
    %721 = vmatpush.msra.mxu0 %v712
    %722 = vmatpush.msra.mxu0 %v711
    %723 = vmatpush.msra.mxu0 %v710
    %724 = vmatpush.msra.mxu0 %v709
    %725 = vmatpush.msra.mxu0 %v708
    %726 = vmatpush.msra.mxu0 %v707
    %727 = vmatpush.msra.mxu0 %v706
    %728 = vmatpush.msra.mxu0 %v705
    %729 = vmatpush.msra.mxu0 %v704
    %730 = vmatpush.msra.mxu0 %v703
    %731 = vmatpush.msra.mxu0 %v702
    %732 = vmatpush.msra.mxu0 %v701
    %733 = vmatmul.f32.gmra.mxu0 %v693
    %v734 = vpop.f32.mrf.mxu0
    %v735 = vadd.f32 0.0, %v734
    %736 = vmatmul.f32.gmra.mxu0 %v694
    %v737 = vpop.f32.mrf.mxu0
    %v738 = vadd.f32 0.0, %v737
    %739 = vmatmul.f32.gmra.mxu0 %v695
    %v740 = vpop.f32.mrf.mxu0
    %v741 = vadd.f32 0.0, %v740
    %742 = vmatmul.f32.gmra.mxu0 %v696
    %v743 = vpop.f32.mrf.mxu0
    %v744 = vadd.f32 0.0, %v743
    %745 = vmatmul.f32.gmra.mxu0 %v697
    %v746 = vpop.f32.mrf.mxu0
    %v747 = vadd.f32 0.0, %v746
    %748 = vmatmul.f32.gmra.mxu0 %v698
    %v749 = vpop.f32.mrf.mxu0
    %v750 = vadd.f32 0.0, %v749
    %751 = vmatmul.f32.gmra.mxu0 %v699
    %v752 = vpop.f32.mrf.mxu0
    %v753 = vadd.f32 0.0, %v752
    %754 = vmatmul.f32.gmra.mxu0 %v700
    %v755 = vpop.f32.mrf.mxu0
    %v756 = vadd.f32 0.0, %v755
    %757 = vdwg.mxu0
    %758 = vmatpush.msra.mxu0 %v676
    %759 = vmatpush.msra.mxu0 %v675
    %760 = vmatpush.msra.mxu0 %v674
    %761 = vmatpush.msra.mxu0 %v673
    %762 = vmatpush.msra.mxu0 %v672
    %763 = vmatpush.msra.mxu0 %v671
    %764 = vmatpush.msra.mxu0 %v670
    %765 = vmatpush.msra.mxu0 %v669
    %766 = vmatpush.msra.mxu0 %v668
    %767 = vmatpush.msra.mxu0 %v667
    %768 = vmatpush.msra.mxu0 %v666
    %769 = vmatpush.msra.mxu0 %v665
    %770 = vmatpush.msra.mxu0 %v664
    %771 = vmatpush.msra.mxu0 %v663
    %772 = vmatpush.msra.mxu0 %v662
    %773 = vmatpush.msra.mxu0 %v661
    %774 = vmatmul.f32.gmra.mxu0 %v653
    %v775 = vpop.f32.mrf.mxu0
    %v776 = vadd.f32 %v735, %v775
    %777 = vmatmul.f32.gmra.mxu0 %v654
    %v778 = vpop.f32.mrf.mxu0
    %v779 = vadd.f32 %v738, %v778
    %780 = vmatmul.f32.gmra.mxu0 %v655
    %v781 = vpop.f32.mrf.mxu0
    %v782 = vadd.f32 %v741, %v781
    %783 = vmatmul.f32.gmra.mxu0 %v656
    %v784 = vpop.f32.mrf.mxu0
    %v785 = vadd.f32 %v744, %v784
    %786 = vmatmul.f32.gmra.mxu0 %v657
    %v787 = vpop.f32.mrf.mxu0
    %v788 = vadd.f32 %v747, %v787
    %789 = vmatmul.f32.gmra.mxu0 %v658
    %v790 = vpop.f32.mrf.mxu0
    %v791 = vadd.f32 %v750, %v790
    %792 = vmatmul.f32.gmra.mxu0 %v659
    %v793 = vpop.f32.mrf.mxu0
    %v794 = vadd.f32 %v753, %v793
    %795 = vmatmul.f32.gmra.mxu0 %v660
    %v796 = vpop.f32.mrf.mxu0
    %v797 = vadd.f32 %v756, %v796
    %798 = vdwg.mxu0
    %v799 = vld [vmem:[#allocation8 + $0x100] sm:$0xff]
    %v800 = vld [vmem:[#allocation8 + $0x108] sm:$0xff]
    %v801 = vld [vmem:[#allocation8 + $0x110] sm:$0xff]
    %v802 = vld [vmem:[#allocation8 + $0x118] sm:$0xff]
    %v803 = vld [vmem:[#allocation8 + $0x120] sm:$0xff]
    %v804 = vld [vmem:[#allocation8 + $0x128] sm:$0xff]
    %v805 = vld [vmem:[#allocation8 + $0x130] sm:$0xff]
    %v806 = vld [vmem:[#allocation8 + $0x138] sm:$0xff]
    %v807 = vld [vmem:[#allocation8 + $0x140] sm:$0xff]
    %v808 = vld [vmem:[#allocation8 + $0x148] sm:$0xff]
    %v809 = vld [vmem:[#allocation8 + $0x150] sm:$0xff]
    %v810 = vld [vmem:[#allocation8 + $0x158] sm:$0xff]
    %v811 = vld [vmem:[#allocation8 + $0x160] sm:$0xff]
    %v812 = vld [vmem:[#allocation8 + $0x168] sm:$0xff]
    %v813 = vld [vmem:[#allocation8 + $0x170] sm:$0xff]
    %v814 = vld [vmem:[#allocation8 + $0x178] sm:$0xff]
    %815 = vmatpush.msra.mxu0 %v814
    %816 = vmatpush.msra.mxu0 %v813
    %817 = vmatpush.msra.mxu0 %v812
    %818 = vmatpush.msra.mxu0 %v811
    %819 = vmatpush.msra.mxu0 %v810
    %820 = vmatpush.msra.mxu0 %v809
    %821 = vmatpush.msra.mxu0 %v808
    %822 = vmatpush.msra.mxu0 %v807
    %823 = vmatpush.msra.mxu0 %v806
    %824 = vmatpush.msra.mxu0 %v805
    %825 = vmatpush.msra.mxu0 %v804
    %826 = vmatpush.msra.mxu0 %v803
    %827 = vmatpush.msra.mxu0 %v802
    %828 = vmatpush.msra.mxu0 %v801
    %829 = vmatpush.msra.mxu0 %v800
    %830 = vmatpush.msra.mxu0 %v799
    %831 = vmatmul.f32.gmra.mxu0 %v629
    %v832 = vpop.f32.mrf.mxu0
    %v833 = vadd.f32 0.0, %v832
    %834 = vmatmul.f32.gmra.mxu0 %v630
    %v835 = vpop.f32.mrf.mxu0
    %v836 = vadd.f32 0.0, %v835
    %837 = vmatmul.f32.gmra.mxu0 %v631
    %v838 = vpop.f32.mrf.mxu0
    %v839 = vadd.f32 0.0, %v838
    %840 = vmatmul.f32.gmra.mxu0 %v632
    %v841 = vpop.f32.mrf.mxu0
    %v842 = vadd.f32 0.0, %v841
    %843 = vmatmul.f32.gmra.mxu0 %v633
    %v844 = vpop.f32.mrf.mxu0
    %v845 = vadd.f32 0.0, %v844
    %846 = vmatmul.f32.gmra.mxu0 %v634
    %v847 = vpop.f32.mrf.mxu0
    %v848 = vadd.f32 0.0, %v847
    %849 = vmatmul.f32.gmra.mxu0 %v635
    %v850 = vpop.f32.mrf.mxu0
    %v851 = vadd.f32 0.0, %v850
    %852 = vmatmul.f32.gmra.mxu0 %v636
    %v853 = vpop.f32.mrf.mxu0
    %v854 = vadd.f32 0.0, %v853
    %855 = vdwg.mxu0
    %v856 = vadd.f32 %v776, %v833
    %v857 = vadd.f32 %v779, %v836
    %v858 = vadd.f32 %v782, %v839
    %v859 = vadd.f32 %v785, %v842
    %v860 = vadd.f32 %v788, %v845
    %v861 = vadd.f32 %v791, %v848
    %v862 = vadd.f32 %v794, %v851
    %v863 = vadd.f32 %v797, %v854
    %v864 = vrot.slane %v629, 1
    %v865 = vrot.slane %v630, 1
    %v866 = vrot.slane %v631, 1
    %v867 = vrot.slane %v632, 1
    %v868 = vrot.slane %v633, 1
    %v869 = vrot.slane %v634, 1
    %v870 = vrot.slane %v635, 1
    %v871 = vrot.slane %v636, 1
    %v872 = vsel %vm401, %v870, %v871
    %v873 = vsel %vm401, %v869, %v870
    %v874 = vsel %vm401, %v868, %v869
    %v875 = vsel %vm401, %v867, %v868
    %v876 = vsel %vm401, %v866, %v867
    %v877 = vsel %vm401, %v865, %v866
    %v878 = vsel %vm401, %v864, %v865
    %v879 = vsel %vm401, %v871, %v864
    %v880 = vsel %vm410, %v878, 0.0
    %v881 = vsel %vm411, %v877, 0.0
    %v882 = vsel %vm412, %v876, 0.0
    %v883 = vsel %vm413, %v875, 0.0
    %v884 = vsel %vm414, %v874, 0.0
    %v885 = vsel %vm415, %v873, 0.0
    %v886 = vsel %vm416, %v872, 0.0
    %v887 = vsel %vm417, %v879, 0.0
    %v888 = vld [vmem:[#allocation8 + $0x180] sm:$0xff]
    %v889 = vld [vmem:[#allocation8 + $0x188] sm:$0xff]
    %v890 = vld [vmem:[#allocation8 + $0x190] sm:$0xff]
    %v891 = vld [vmem:[#allocation8 + $0x198] sm:$0xff]
    %v892 = vld [vmem:[#allocation8 + $0x1a0] sm:$0xff]
    %v893 = vld [vmem:[#allocation8 + $0x1a8] sm:$0xff]
    %v894 = vld [vmem:[#allocation8 + $0x1b0] sm:$0xff]
    %v895 = vld [vmem:[#allocation8 + $0x1b8] sm:$0xff]
    %v896 = vld [vmem:[#allocation8 + $0x1c0] sm:$0xff]
    %v897 = vld [vmem:[#allocation8 + $0x1c8] sm:$0xff]
    %v898 = vld [vmem:[#allocation8 + $0x1d0] sm:$0xff]
    %v899 = vld [vmem:[#allocation8 + $0x1d8] sm:$0xff]
    %v900 = vld [vmem:[#allocation8 + $0x1e0] sm:$0xff]
    %v901 = vld [vmem:[#allocation8 + $0x1e8] sm:$0xff]
    %v902 = vld [vmem:[#allocation8 + $0x1f0] sm:$0xff]
    %v903 = vld [vmem:[#allocation8 + $0x1f8] sm:$0xff]
    %904 = vmatpush.msra.mxu0 %v903
    %905 = vmatpush.msra.mxu0 %v902
    %906 = vmatpush.msra.mxu0 %v901
    %907 = vmatpush.msra.mxu0 %v900
    %908 = vmatpush.msra.mxu0 %v899
    %909 = vmatpush.msra.mxu0 %v898
    %910 = vmatpush.msra.mxu0 %v897
    %911 = vmatpush.msra.mxu0 %v896
    %912 = vmatpush.msra.mxu0 %v895
    %913 = vmatpush.msra.mxu0 %v894
    %914 = vmatpush.msra.mxu0 %v893
    %915 = vmatpush.msra.mxu0 %v892
    %916 = vmatpush.msra.mxu0 %v891
    %917 = vmatpush.msra.mxu0 %v890
    %918 = vmatpush.msra.mxu0 %v889
    %919 = vmatpush.msra.mxu0 %v888
    %920 = vmatmul.f32.gmra.mxu0 %v880
    %v921 = vpop.f32.mrf.mxu0
    %v922 = vadd.f32 0.0, %v921
    %923 = vmatmul.f32.gmra.mxu0 %v881
    %v924 = vpop.f32.mrf.mxu0
    %v925 = vadd.f32 0.0, %v924
    %926 = vmatmul.f32.gmra.mxu0 %v882
    %v927 = vpop.f32.mrf.mxu0
    %v928 = vadd.f32 0.0, %v927
    %929 = vmatmul.f32.gmra.mxu0 %v883
    %v930 = vpop.f32.mrf.mxu0
    %v931 = vadd.f32 0.0, %v930
    %932 = vmatmul.f32.gmra.mxu0 %v884
    %v933 = vpop.f32.mrf.mxu0
    %v934 = vadd.f32 0.0, %v933
    %935 = vmatmul.f32.gmra.mxu0 %v885
    %v936 = vpop.f32.mrf.mxu0
    %v937 = vadd.f32 0.0, %v936
    %938 = vmatmul.f32.gmra.mxu0 %v886
    %v939 = vpop.f32.mrf.mxu0
    %v940 = vadd.f32 0.0, %v939
    %941 = vmatmul.f32.gmra.mxu0 %v887
    %v942 = vpop.f32.mrf.mxu0
    %v943 = vadd.f32 0.0, %v942
    %944 = vdwg.mxu0
    %v945 = vadd.f32 %v856, %v922
    %v946 = vadd.f32 %v857, %v925
    %v947 = vadd.f32 %v858, %v928
    %v948 = vadd.f32 %v859, %v931
    %v949 = vadd.f32 %v860, %v934
    %v950 = vadd.f32 %v861, %v937
    %v951 = vadd.f32 %v862, %v940
    %v952 = vadd.f32 %v863, %v943
    %v953 = vrot.slane %v629, 2
    %v954 = vrot.slane %v630, 2
    %v955 = vrot.slane %v631, 2
    %v956 = vrot.slane %v632, 2
    %v957 = vrot.slane %v633, 2
    %v958 = vrot.slane %v634, 2
    %v959 = vrot.slane %v635, 2
    %v960 = vrot.slane %v636, 2
    %v961 = vsel %vm499, %v959, %v960
    %v962 = vsel %vm499, %v958, %v959
    %v963 = vsel %vm499, %v957, %v958
    %v964 = vsel %vm499, %v956, %v957
    %v965 = vsel %vm499, %v955, %v956
    %v966 = vsel %vm499, %v954, %v955
    %v967 = vsel %vm499, %v953, %v954
    %v968 = vsel %vm499, %v960, %v953
    %v969 = vsel %vm508, %v967, 0.0
    %v970 = vsel %vm509, %v966, 0.0
    %v971 = vsel %vm510, %v965, 0.0
    %v972 = vsel %vm511, %v964, 0.0
    %v973 = vsel %vm512, %v963, 0.0
    %v974 = vsel %vm513, %v962, 0.0
    %v975 = vsel %vm514, %v961, 0.0
    %v976 = vsel %vm515, %v968, 0.0
    %v977 = vld [vmem:[#allocation8 + $0x200] sm:$0xff]
    %v978 = vld [vmem:[#allocation8 + $0x208] sm:$0xff]
    %v979 = vld [vmem:[#allocation8 + $0x210] sm:$0xff]
    %v980 = vld [vmem:[#allocation8 + $0x218] sm:$0xff]
    %v981 = vld [vmem:[#allocation8 + $0x220] sm:$0xff]
    %v982 = vld [vmem:[#allocation8 + $0x228] sm:$0xff]
    %v983 = vld [vmem:[#allocation8 + $0x230] sm:$0xff]
    %v984 = vld [vmem:[#allocation8 + $0x238] sm:$0xff]
    %v985 = vld [vmem:[#allocation8 + $0x240] sm:$0xff]
    %v986 = vld [vmem:[#allocation8 + $0x248] sm:$0xff]
    %v987 = vld [vmem:[#allocation8 + $0x250] sm:$0xff]
    %v988 = vld [vmem:[#allocation8 + $0x258] sm:$0xff]
    %v989 = vld [vmem:[#allocation8 + $0x260] sm:$0xff]
    %v990 = vld [vmem:[#allocation8 + $0x268] sm:$0xff]
    %v991 = vld [vmem:[#allocation8 + $0x270] sm:$0xff]
    %v992 = vld [vmem:[#allocation8 + $0x278] sm:$0xff]
    %993 = vmatpush.msra.mxu0 %v992
    %994 = vmatpush.msra.mxu0 %v991
    %995 = vmatpush.msra.mxu0 %v990
    %996 = vmatpush.msra.mxu0 %v989
    %997 = vmatpush.msra.mxu0 %v988
    %998 = vmatpush.msra.mxu0 %v987
    %999 = vmatpush.msra.mxu0 %v986
    %1000 = vmatpush.msra.mxu0 %v985
    %1001 = vmatpush.msra.mxu0 %v984
    %1002 = vmatpush.msra.mxu0 %v983
    %1003 = vmatpush.msra.mxu0 %v982
    %1004 = vmatpush.msra.mxu0 %v981
    %1005 = vmatpush.msra.mxu0 %v980
    %1006 = vmatpush.msra.mxu0 %v979
    %1007 = vmatpush.msra.mxu0 %v978
    %1008 = vmatpush.msra.mxu0 %v977
    %1009 = vmatmul.f32.gmra.mxu0 %v969
    %v1010 = vpop.f32.mrf.mxu0
    %v1011 = vadd.f32 0.0, %v1010
    %1012 = vmatmul.f32.gmra.mxu0 %v970
    %v1013 = vpop.f32.mrf.mxu0
    %v1014 = vadd.f32 0.0, %v1013
    %1015 = vmatmul.f32.gmra.mxu0 %v971
    %v1016 = vpop.f32.mrf.mxu0
    %v1017 = vadd.f32 0.0, %v1016
    %1018 = vmatmul.f32.gmra.mxu0 %v972
    %v1019 = vpop.f32.mrf.mxu0
    %v1020 = vadd.f32 0.0, %v1019
    %1021 = vmatmul.f32.gmra.mxu0 %v973
    %v1022 = vpop.f32.mrf.mxu0
    %v1023 = vadd.f32 0.0, %v1022
    %1024 = vmatmul.f32.gmra.mxu0 %v974
    %v1025 = vpop.f32.mrf.mxu0
    %v1026 = vadd.f32 0.0, %v1025
    %1027 = vmatmul.f32.gmra.mxu0 %v975
    %v1028 = vpop.f32.mrf.mxu0
    %v1029 = vadd.f32 0.0, %v1028
    %1030 = vmatmul.f32.gmra.mxu0 %v976
    %v1031 = vpop.f32.mrf.mxu0
    %v1032 = vadd.f32 0.0, %v1031
    %1033 = vdwg.mxu0
    %v1034 = vadd.f32 %v945, %v1011
    %v1035 = vadd.f32 %v946, %v1014
    %v1036 = vadd.f32 %v947, %v1017
    %v1037 = vadd.f32 %v948, %v1020
    %v1038 = vadd.f32 %v949, %v1023
    %v1039 = vadd.f32 %v950, %v1026
    %v1040 = vadd.f32 %v951, %v1029
    %v1041 = vadd.f32 %v952, %v1032
    %v1042 = vld [vmem:[%s7] sm:$0x1]
    %v1044 = vperm.slane %v1042, 0
    %v1046 = vmul.f32 %v1034, %v1044
    %v1047 = vmul.f32 %v1035, %v1044
    %v1048 = vmul.f32 %v1036, %v1044
    %v1049 = vmul.f32 %v1037, %v1044
    %v1050 = vmul.f32 %v1038, %v1044
    %v1051 = vmul.f32 %v1039, %v1044
    %v1052 = vmul.f32 %v1040, %v1044
    %v1053 = vmul.f32 %v1041, %v1044
    %v1054 = vld [vmem:[%s8] sm:$0x1]
    %v1056 = vperm.slane %v1054, 0
    %v1058 = vadd.f32 %v1046, %v1056
    %v1059 = vadd.f32 %v1047, %v1056
    %v1060 = vadd.f32 %v1048, %v1056
    %v1061 = vadd.f32 %v1049, %v1056
    %v1062 = vadd.f32 %v1050, %v1056
    %v1063 = vadd.f32 %v1051, %v1056
    %v1064 = vadd.f32 %v1052, %v1056
    %v1065 = vadd.f32 %v1053, %v1056
    %v1066 = vmax.f32 %v1058, 0.0
    %v1067 = vmax.f32 %v1059, 0.0
    %v1068 = vmax.f32 %v1060, 0.0
    %v1069 = vmax.f32 %v1061, 0.0
    %v1070 = vmax.f32 %v1062, 0.0
    %v1071 = vmax.f32 %v1063, 0.0
    %v1072 = vmax.f32 %v1064, 0.0
    %v1073 = vmax.f32 %v1065, 0.0
    %1074 = vst [vmem:[#allocation2] sm:$0xff] %v1066
    %1075 = vst [vmem:[#allocation2 + $0x8] sm:$0xff] %v1067
    %1076 = vst [vmem:[#allocation2 + $0x10] sm:$0xff] %v1068
    %1077 = vst [vmem:[#allocation2 + $0x18] sm:$0xff] %v1069
    %1078 = vst [vmem:[#allocation2 + $0x20] sm:$0xff] %v1070
    %1079 = vst [vmem:[#allocation2 + $0x28] sm:$0xff] %v1071
    %1080 = vst [vmem:[#allocation2 + $0x30] sm:$0xff] %v1072
    %1081 = vst [vmem:[#allocation2 + $0x38] sm:$0xff] %v1073
    %v1082 = vld [vmem:[#allocation3] sm:$0xf]
    %v1083 = vld [vmem:[#allocation2] sm:$0xff]
    %v1084 = vld [vmem:[#allocation2 + $0x8] sm:$0xff]
    %v1085 = vld [vmem:[#allocation2 + $0x10] sm:$0xff]
    %v1086 = vld [vmem:[#allocation2 + $0x18] sm:$0xff]
    %v1087 = vld [vmem:[#allocation2 + $0x20] sm:$0xff]
    %v1088 = vld [vmem:[#allocation2 + $0x28] sm:$0xff]
    %v1089 = vld [vmem:[#allocation2 + $0x30] sm:$0xff]
    %v1090 = vld [vmem:[#allocation2 + $0x38] sm:$0xff]
    %vm1091 = vcmask 523264
    %v1093 = vsel %vm1091, %v1082, 0
    %1095 = vmatpush.msra.mxu0 0.0
    %1096 = vmatpush.msra.mxu0 0.0
    %1097 = vmatpush.msra.mxu0 0.0
    %1098 = vmatpush.msra.mxu0 0.0
    %1099 = vmatpush.msra.mxu0 0.0
    %1100 = vmatpush.msra.mxu0 0.0
    %1101 = vmatpush.msra.mxu0 0.0
    %1102 = vmatpush.msra.mxu0 0.0
    %1103 = vmatpush.msra.mxu0 %v1090
    %1104 = vmatpush.msra.mxu0 %v1089
    %1105 = vmatpush.msra.mxu0 %v1088
    %1106 = vmatpush.msra.mxu0 %v1087
    %1107 = vmatpush.msra.mxu0 %v1086
    %1108 = vmatpush.msra.mxu0 %v1085
    %1109 = vmatpush.msra.mxu0 %v1084
    %1110 = vmatpush.msra.mxu0 %v1083
    %1111 = vmatmul.f32.gmra.mxu0 %v1093
    %v1112 = vpop.f32.mrf.mxu0
    %v1113 = vadd.f32 0.0, %v1112
    %1114 = vdwg.mxu0
    %v1115 = vld [vmem:[%s9] sm:$0xff]
    %v1116 = vld [vmem:[%s9 + $0x8] sm:$0xff]
    %v1117 = vld [vmem:[%s10] sm:$0x1]
    %v1119 = vperm.slane %v1117, 0
    %vm1121 = vcmask 130048
    %v1123 = vsel %vm1121, %v1113, 0
    %1125 = vmatpush.msra.mxu0 0.0
    %1126 = vmatpush.msra.mxu0 0.0
    %1127 = vmatpush.msra.mxu0 0.0
    %1128 = vmatpush.msra.mxu0 0.0
    %1129 = vmatpush.msra.mxu0 0.0
    %1130 = vmatpush.msra.mxu0 0.0
    %1131 = vmatpush.msra.mxu0 0.0
    %1132 = vmatpush.msra.mxu0 0.0
    %1133 = vmatpush.msra.mxu0 0.0
    %1134 = vmatpush.msra.mxu0 0.0
    %1135 = vmatpush.msra.mxu0 0.0
    %1136 = vmatpush.msra.mxu0 0.0
    %1137 = vmatpush.msra.mxu0 0.0
    %1138 = vmatpush.msra.mxu0 0.0
    %1139 = vmatpush.msra.mxu0 %v1116
    %1140 = vmatpush.msra.mxu0 %v1115
    %1141 = vmatmul.f32.gmra.mxu0 %v1123
    %v1142 = vpop.f32.mrf.mxu0
    %v1143 = vadd.f32 %v1119, %v1142
    %1144 = vdwg.mxu0
    %1146 = vrot.lane.b32.xlu0 %v1143, 112
    %v1147 = vpop.permute.xlu0 %1146
    %vm1149 = vcmask 19456
    %1150 = vst.msk [vmem:[#allocation9] sm:$0xf] %vm1149, %v1147
    %v1151 = vld [vmem:[%s11] sm:$0x1]
    %v1153 = vsel %vm1121, %v1151, 0
    %v1155 = vsel %vm1121, %v1143, 0
    %1157 = vmatpush.xpose.msra.mxu0 0.0
    %1158 = vmatpush.xpose.msra.mxu0 0.0
    %1159 = vmatpush.xpose.msra.mxu0 0.0
    %1160 = vmatpush.xpose.msra.mxu0 0.0
    %1161 = vmatpush.xpose.msra.mxu0 0.0
    %1162 = vmatpush.xpose.msra.mxu0 0.0
    %1163 = vmatpush.xpose.msra.mxu0 0.0
    %1164 = vmatpush.xpose.msra.mxu0 0.0
    %1165 = vmatpush.xpose.msra.mxu0 0.0
    %1166 = vmatpush.xpose.msra.mxu0 0.0
    %1167 = vmatpush.xpose.msra.mxu0 0.0
    %1168 = vmatpush.xpose.msra.mxu0 0.0
    %1169 = vmatpush.xpose.msra.mxu0 0.0
    %1170 = vmatpush.xpose.msra.mxu0 0.0
    %1171 = vmatpush.xpose.msra.mxu0 0.0
    %1172 = vmatpush.xpose.msra.mxu0 %v1155
    %1173 = vmatmul.f32.gmra.mxu0 %v1153
    %v1174 = vpop.f32.mrf.mxu0
    %v1175 = vadd.f32 0.0, %v1174
    %1176 = vdwg.mxu0
    %v1177 = vld [vmem:[%s12] sm:$0xff]
    %v1178 = vld [vmem:[%s12 + $0x8] sm:$0xff]
    %1179 = vmatpush.msra.mxu0 0.0
    %1180 = vmatpush.msra.mxu0 0.0
    %1181 = vmatpush.msra.mxu0 0.0
    %1182 = vmatpush.msra.mxu0 0.0
    %1183 = vmatpush.msra.mxu0 0.0
    %1184 = vmatpush.msra.mxu0 0.0
    %1185 = vmatpush.msra.mxu0 0.0
    %1186 = vmatpush.msra.mxu0 0.0
    %1187 = vmatpush.msra.mxu0 0.0
    %1188 = vmatpush.msra.mxu0 0.0
    %1189 = vmatpush.msra.mxu0 0.0
    %1190 = vmatpush.msra.mxu0 0.0
    %1191 = vmatpush.msra.mxu0 0.0
    %1192 = vmatpush.msra.mxu0 0.0
    %1193 = vmatpush.msra.mxu0 %v1178
    %1194 = vmatpush.msra.mxu0 %v1177
    %1195 = vmatmul.f32.gmra.mxu0 %v1155
    %v1196 = vpop.f32.mrf.mxu0
    %v1197 = vadd.f32 0.0, %v1196
    %1198 = vdwg.mxu0
    %1200 = vset.pattern.permute.xlu0 0
    %1201 = vperm.xlu0 %1200, %v1197
    %v1202 = vpop.permute.xlu0 %1201
    %v1204 = vperm.slane %v1175, 0
    %v1205 = vadd.f32 %v1202, %v1204
    %vm1206 = vcmp.ge.f32.partialorder %v1205, 0.0
    %v1207 = vmul.f32 %v1205, 0.01
    %v1208 = vsel %vm1206, %v1205, %v1207
    %vm1209 = vcmask 27648
    %v1210 = vsel %vm1209, %v1208, -inf
    %1211 = vmax.xlane.f32.xlu0 %v1210
    %v1212 = vpop.xlane.xlu0 %1211
    %v1213 = vsub.f32 %v1208, %v1212
    %v1214 = vmul.f32 %v1213, 1.442695
    %v1215 = vpow.pop %v1214
    %v1216 = vsel %vm1209, %v1215, 0.0
    %1217 = vadd.xlane.f32.xlu0 %v1216
    %v1218 = vpop.xlane.xlu0 %1217
    %v1219 = vrcp.pop %v1218
    %v1220 = vmul.f32 %v1215, %v1219
    %vm1221 = vcmask 31744
    %v1223 = vsel %vm1221, %v1220, 0
    %vm1225 = vcmask 1043456
    %v1226 = vsel %vm1225, %v1113, 0
    %1228 = vmatpush.msra.mxu0 0.0
    %1229 = vmatpush.msra.mxu0 0.0
    %1230 = vmatpush.msra.mxu0 0.0
    %1231 = vmatpush.msra.mxu0 0.0
    %1232 = vmatpush.msra.mxu0 0.0
    %1233 = vmatpush.msra.mxu0 0.0
    %1234 = vmatpush.msra.mxu0 0.0
    %1235 = vmatpush.msra.mxu0 0.0
    %1236 = vmatpush.msra.mxu0 0.0
    %1237 = vmatpush.msra.mxu0 0.0
    %1238 = vmatpush.msra.mxu0 0.0
    %1239 = vmatpush.msra.mxu0 0.0
    %1240 = vmatpush.msra.mxu0 0.0
    %1241 = vmatpush.msra.mxu0 0.0
    %1242 = vmatpush.msra.mxu0 0.0
    %1243 = vmatpush.msra.mxu0 %v1226
    %1244 = vmatmul.f32.gmra.mxu0 %v1223
    %v1245 = vpop.f32.mrf.mxu0
    %v1246 = vadd.f32 %v1113, %v1245
    %1247 = vdwg.mxu0
    %vm1248 = vcmask 125952
    %1249 = vst.msk [vmem:[#allocation12] sm:$0xf] %vm1248, %v1246
    %v1250 = vld [vmem:[%s13] sm:$0xff]
    %v1251 = vld [vmem:[%s13 + $0x8] sm:$0xff]
    %v1252 = vld [vmem:[%s14] sm:$0x1]
    %v1254 = vperm.slane %v1252, 0
    %v1257 = vsel %vm1121, %v1246, 0
    %1259 = vmatpush.msra.mxu0 0.0
    %1260 = vmatpush.msra.mxu0 0.0
    %1261 = vmatpush.msra.mxu0 0.0
    %1262 = vmatpush.msra.mxu0 0.0
    %1263 = vmatpush.msra.mxu0 0.0
    %1264 = vmatpush.msra.mxu0 0.0
    %1265 = vmatpush.msra.mxu0 0.0
    %1266 = vmatpush.msra.mxu0 0.0
    %1267 = vmatpush.msra.mxu0 0.0
    %1268 = vmatpush.msra.mxu0 0.0
    %1269 = vmatpush.msra.mxu0 0.0
    %1270 = vmatpush.msra.mxu0 0.0
    %1271 = vmatpush.msra.mxu0 0.0
    %1272 = vmatpush.msra.mxu0 0.0
    %1273 = vmatpush.msra.mxu0 %v1251
    %1274 = vmatpush.msra.mxu0 %v1250
    %1275 = vmatmul.f32.gmra.mxu0 %v1257
    %v1276 = vpop.f32.mrf.mxu0
    %v1277 = vadd.f32 %v1254, %v1276
    %1278 = vdwg.mxu0
    %vm1279 = vcmp.ge.f32.partialorder %v1277, 0.0
    %v1280 = vmul.f32 %v1277, 0.01
    %v1281 = vsel %vm1279, %v1277, %v1280
    %v1282 = vld [vmem:[%s15] sm:$0xff]
    %v1283 = vld [vmem:[%s15 + $0x8] sm:$0xff]
    %v1284 = vld [vmem:[%s16] sm:$0x1]
    %v1286 = vperm.slane %v1284, 0
    %v1289 = vsel %vm1121, %v1281, 0
    %1291 = vmatpush.msra.mxu0 0.0
    %1292 = vmatpush.msra.mxu0 0.0
    %1293 = vmatpush.msra.mxu0 0.0
    %1294 = vmatpush.msra.mxu0 0.0
    %1295 = vmatpush.msra.mxu0 0.0
    %1296 = vmatpush.msra.mxu0 0.0
    %1297 = vmatpush.msra.mxu0 0.0
    %1298 = vmatpush.msra.mxu0 0.0
    %1299 = vmatpush.msra.mxu0 0.0
    %1300 = vmatpush.msra.mxu0 0.0
    %1301 = vmatpush.msra.mxu0 0.0
    %1302 = vmatpush.msra.mxu0 0.0
    %1303 = vmatpush.msra.mxu0 0.0
    %1304 = vmatpush.msra.mxu0 0.0
    %1305 = vmatpush.msra.mxu0 %v1283
    %1306 = vmatpush.msra.mxu0 %v1282
    %1307 = vmatmul.f32.gmra.mxu0 %v1289
    %v1308 = vpop.f32.mrf.mxu0
    %v1309 = vadd.f32 %v1286, %v1308
    %1310 = vdwg.mxu0
    %1311 = vst.msk [vmem:[#allocation10] sm:$0xf] %vm1149, %v1309
    // Predicated region
    $region82: #{tpu_custom_call.1} parent=1 // pred_check
      _
    $region83: #{tpu_custom_call.1} parent=1 // pred_check_branch
      %1313 = sbr.rel (0) target = $region85
    $region84: #{tpu_custom_call.1} parent=1 // pred_region
      %1315 = vsyncadd [#allocation5], 0
      %s1317 = sshll.u32 [#allocation9], 4
      %s1318 = int_to_ptr.vmem [resolvable:$true] %s1317
      %s1319 = sshll.u32 %s17, 4
      %s1320 = int_to_ptr.hbm [resolvable:$true] %s1319
      %1322 = dma.vmem_to_hbm [thread:$0]  %s1318, 64, %s1320, [#allocation5]
    $region85: #{tpu_custom_call.1} parent=1 // pred_fallthru
      _
    // Predicated region
    $region86: #{tpu_custom_call.1} parent=1 // pred_check
      _
    $region87: #{tpu_custom_call.1} parent=1 // pred_check_branch
      %1324 = sbr.rel (0) target = $region89
    $region88: #{tpu_custom_call.1} parent=1 // pred_region
      %1326 = vsyncadd [#allocation11], 0
      %s1328 = sshll.u32 [#allocation10], 4
      %s1329 = int_to_ptr.vmem [resolvable:$true] %s1328
      %s1330 = sshll.u32 %s18, 4
      %s1331 = int_to_ptr.hbm [resolvable:$true] %s1330
      %1333 = dma.vmem_to_hbm [thread:$0]  %s1329, 64, %s1331, [#allocation11]
    $region89: #{tpu_custom_call.1} parent=1 // pred_fallthru
      _
    // Predicated region
    $region90: #{tpu_custom_call.1} parent=1 // pred_check
      _
    $region91: #{tpu_custom_call.1} parent=1 // pred_check_branch
      %1335 = sbr.rel (0) target = $region93
    $region92: #{tpu_custom_call.1} parent=1 // pred_region
      %1337 = vsyncadd [#allocation11], 0
      %s1339 = sshll.u32 [#allocation12], 4
      %s1340 = int_to_ptr.vmem [resolvable:$true] %s1339
      %s1341 = sshll.u32 %s19, 4
      %s1342 = int_to_ptr.hbm [resolvable:$true] %s1341
      %1344 = dma.vmem_to_hbm [thread:$0]  %s1340, 64, %s1342, [#allocation11]
    $region93: #{tpu_custom_call.1} parent=1 // pred_fallthru
      _
    // Predicated region
    $region94: #{tpu_custom_call.1} parent=1 // pred_check
      _
    $region95: #{tpu_custom_call.1} parent=1 // pred_check_branch
      %1346 = sbr.rel (0) target = $region97
    $region96: #{tpu_custom_call.1} parent=1 // pred_region
      %1348 = dma.done [#allocation5], 64
    $region97: #{tpu_custom_call.1} parent=1 // pred_fallthru
      _
    // Predicated region
    $region98: #{tpu_custom_call.1} parent=1 // pred_check
      _
    $region99: #{tpu_custom_call.1} parent=1 // pred_check_branch
      %1350 = sbr.rel (0) target = $region101
    $region100: #{tpu_custom_call.1} parent=1 // pred_region
      %1352 = dma.done [#allocation11], 64
    $region101: #{tpu_custom_call.1} parent=1 // pred_fallthru
      _
    // Predicated region
    $region102: #{tpu_custom_call.1} parent=1 // pred_check
      _
    $region103: #{tpu_custom_call.1} parent=1 // pred_check_branch
      %1354 = sbr.rel (0) target = $region105
    $region104: #{tpu_custom_call.1} parent=1 // pred_region
      %1356 = dma.done [#allocation11], 64
    $region105: #{tpu_custom_call.1} parent=1 // pred_fallthru
      _
    %1357 = vsyncpa [#allocation4], 1
    %1358 = vsyncpa [#allocation7], 1
    %1359 = vsyncpa [#allocation5], 1
    %1360 = vsyncpa [#allocation11], 1

</llo_original>
